<compile_context>
chip_gen: v5e
topology: v5e:2x2
jax: 0.10.0
libtpu: 0.0.40
codegen_flags: <defaults>
</compile_context>

<pallas_src>
import jax
import jax.numpy as jnp
from jax.experimental import pallas as pl
from jax.experimental.pallas import tpu as pltpu


def _make_gather_kernel(tok_tile):
    def kernel(ids_ref, table_ref, out_ref, sem):
        # ids_ref:   (N_padded,)    int32, SMEM (scalar-prefetched token ids)
        # table_ref: (V, D)         HBM ref (memory_space=pl.ANY)
        # out_ref:   (tok_tile, D)  VMEM output block
        # sem:       single DMA semaphore shared by the in-flight row copies
        base = pl.program_id(0) * tok_tile
        copies = []
        for r in range(tok_tile):            # static unroll: issue all gathers
            tok = ids_ref[base + r]           # dynamic scalar read from SMEM
            cp = pltpu.make_async_copy(table_ref.at[tok], out_ref.at[r], sem)
            cp.start()
            copies.append(cp)
        for cp in copies:                     # drain: all rows landed in VMEM
            cp.wait()

    return kernel


def _round_up(n, m):
    return ((n + m - 1) // m) * m


def token_embeddings(x, table, *, tok_tile=128):
    """x: [B, T] integer token ids; table: [n_tokens, n_embd].

    Returns [B, T, n_embd] == nn.Embedding(n_tokens, n_embd)(x).
    """
    B, T = x.shape
    V, D = table.shape
    N = B * T

    # Sublane-aligned tile; never larger than the (padded) problem size.
    tok_tile = max(8, _round_up(min(tok_tile, _round_up(N, 8)), 8))
    n_pad = _round_up(N, tok_tile)

    # Clamp (OOB id -> last row instead of OOB HBM read) and pad with id 0.
    ids = jnp.clip(x.reshape(N).astype(jnp.int32), 0, V - 1)
    ids = jnp.pad(ids, (0, n_pad - N))

    itemsize = jnp.dtype(table.dtype).itemsize
    cost = pl.CostEstimate(
        flops=0,
        transcendentals=0,
        bytes_accessed=2 * n_pad * D * itemsize + n_pad * 4,
    )

    out_flat = pl.pallas_call(
        _make_gather_kernel(tok_tile),
        out_shape=jax.ShapeDtypeStruct((n_pad, D), table.dtype),
        grid_spec=pltpu.PrefetchScalarGridSpec(
            num_scalar_prefetch=1,                 # ids -> SMEM before the grid
            grid=(n_pad // tok_tile,),
            in_specs=[
                pl.BlockSpec(memory_space=pl.ANY),  # table stays in HBM
            ],
            out_specs=pl.BlockSpec((tok_tile, D), lambda i, ids: (i, 0)),
            scratch_shapes=[pltpu.SemaphoreType.DMA],
        ),
        compiler_params=pltpu.CompilerParams(
            dimension_semantics=("arbitrary",),
        ),
        cost_estimate=cost,
    )(ids, table)

    return out_flat[:N].reshape(B, T, D)


if __name__ == "__main__":
    # Small deterministic setup consistent with the module:
    #   n_tokens (vocab) = 64, n_embd = 128, batch = 2, seq = 16
    n_tokens, n_embd = 64, 128
    B, T = 2, 16

    key = jax.random.PRNGKey(0)
    k_tab, k_ids = jax.random.split(key)

    # nn.Embedding default init: weight ~ N(0, 1)
    table = jax.random.normal(k_tab, (n_tokens, n_embd), dtype=jnp.float32)
    x = jax.random.randint(k_ids, (B, T), 0, n_tokens, dtype=jnp.int32)

    out = token_embeddings(x, table)
    out = jax.block_until_ready(out)

    # Sanity check against a plain-JAX reference gather.
    ref = table[x]
    assert out.shape == (B, T, n_embd)
    assert out.dtype == jnp.float32
    assert jnp.allclose(out, ref), "mismatch vs reference embedding gather"

    print("KERNEL_OK")
</pallas_src>

<mosaic_0001>
module attributes {stable_mosaic.version = 11 : i64} {
  func.func @kernel(%arg0: i32, %arg1: memref<32xi32, #tpu.memory_space<smem>>, %arg2: memref<64x128xf32, #tpu.memory_space<any>>, %arg3: memref<32x128xf32, #tpu.memory_space<vmem>>, %arg4: memref<!tpu.dma_semaphore, #tpu.memory_space<semaphore_mem>>) attributes {dimension_semantics = [#tpu.dimension_semantics<arbitrary>], iteration_bounds = array<i64: 1>, scalar_prefetch = 1 : i64, scratch_operands = 1 : i64, tpu.core_type = #tpu.core_type<tc>, window_params = [{}, {transform_indices = @transform_1, window_bounds = array<i64: 32, 128>}]} {
    %c32_i32 = arith.constant 32 : i32
    %0 = arith.muli %arg0, %c32_i32 : i32
    %c0_i32 = arith.constant 0 : i32
    %1 = arith.addi %0, %c0_i32 : i32
    %2 = arith.index_cast %1 : i32 to index
    %3 = memref.load %arg1[%2] : memref<32xi32, #tpu.memory_space<smem>>
    %c0_i32_0 = arith.constant 0 : i32
    %c0_i32_1 = arith.constant 0 : i32
    %4 = tpu.memref_slice %arg2[%3, %c0_i32_1] : memref<64x128xf32, #tpu.memory_space<any>> -> memref<1x128xf32, #tpu.memory_space<any>>
    %5 = tpu.memref_squeeze %4 : memref<1x128xf32, #tpu.memory_space<any>> -> memref<128xf32, #tpu.memory_space<any>>
    %c0_i32_2 = arith.constant 0 : i32
    %6 = tpu.memref_slice %arg3[%c0_i32_0, %c0_i32_2] : memref<32x128xf32, #tpu.memory_space<vmem>> -> memref<1x128xf32, #tpu.memory_space<vmem>>
    %7 = tpu.memref_squeeze %6 : memref<1x128xf32, #tpu.memory_space<vmem>> -> memref<128xf32, #tpu.memory_space<vmem>>
    tpu.enqueue_dma source(%5 : memref<128xf32, #tpu.memory_space<any>>) target(%7 : memref<128xf32, #tpu.memory_space<vmem>>) target_semaphore(%arg4 : memref<!tpu.dma_semaphore, #tpu.memory_space<semaphore_mem>>)
    %c1_i32 = arith.constant 1 : i32
    %8 = arith.addi %0, %c1_i32 : i32
    %9 = arith.index_cast %8 : i32 to index
    %10 = memref.load %arg1[%9] : memref<32xi32, #tpu.memory_space<smem>>
    %c1_i32_3 = arith.constant 1 : i32
    %c0_i32_4 = arith.constant 0 : i32
    %11 = tpu.memref_slice %arg2[%10, %c0_i32_4] : memref<64x128xf32, #tpu.memory_space<any>> -> memref<1x128xf32, #tpu.memory_space<any>>
    %12 = tpu.memref_squeeze %11 : memref<1x128xf32, #tpu.memory_space<any>> -> memref<128xf32, #tpu.memory_space<any>>
    %c0_i32_5 = arith.constant 0 : i32
    %13 = tpu.memref_slice %arg3[%c1_i32_3, %c0_i32_5] : memref<32x128xf32, #tpu.memory_space<vmem>> -> memref<1x128xf32, #tpu.memory_space<vmem>>
    %14 = tpu.memref_squeeze %13 : memref<1x128xf32, #tpu.memory_space<vmem>> -> memref<128xf32, #tpu.memory_space<vmem>>
    tpu.enqueue_dma source(%12 : memref<128xf32, #tpu.memory_space<any>>) target(%14 : memref<128xf32, #tpu.memory_space<vmem>>) target_semaphore(%arg4 : memref<!tpu.dma_semaphore, #tpu.memory_space<semaphore_mem>>)
    %c2_i32 = arith.constant 2 : i32
    %15 = arith.addi %0, %c2_i32 : i32
    %16 = arith.index_cast %15 : i32 to index
    %17 = memref.load %arg1[%16] : memref<32xi32, #tpu.memory_space<smem>>
    %c2_i32_6 = arith.constant 2 : i32
    %c0_i32_7 = arith.constant 0 : i32
    %18 = tpu.memref_slice %arg2[%17, %c0_i32_7] : memref<64x128xf32, #tpu.memory_space<any>> -> memref<1x128xf32, #tpu.memory_space<any>>
    %19 = tpu.memref_squeeze %18 : memref<1x128xf32, #tpu.memory_space<any>> -> memref<128xf32, #tpu.memory_space<any>>
    %c0_i32_8 = arith.constant 0 : i32
    %20 = tpu.memref_slice %arg3[%c2_i32_6, %c0_i32_8] : memref<32x128xf32, #tpu.memory_space<vmem>> -> memref<1x128xf32, #tpu.memory_space<vmem>>
    %21 = tpu.memref_squeeze %20 : memref<1x128xf32, #tpu.memory_space<vmem>> -> memref<128xf32, #tpu.memory_space<vmem>>
    tpu.enqueue_dma source(%19 : memref<128xf32, #tpu.memory_space<any>>) target(%21 : memref<128xf32, #tpu.memory_space<vmem>>) target_semaphore(%arg4 : memref<!tpu.dma_semaphore, #tpu.memory_space<semaphore_mem>>)
    %c3_i32 = arith.constant 3 : i32
    %22 = arith.addi %0, %c3_i32 : i32
    %23 = arith.index_cast %22 : i32 to index
    %24 = memref.load %arg1[%23] : memref<32xi32, #tpu.memory_space<smem>>
    %c3_i32_9 = arith.constant 3 : i32
    %c0_i32_10 = arith.constant 0 : i32
    %25 = tpu.memref_slice %arg2[%24, %c0_i32_10] : memref<64x128xf32, #tpu.memory_space<any>> -> memref<1x128xf32, #tpu.memory_space<any>>
    %26 = tpu.memref_squeeze %25 : memref<1x128xf32, #tpu.memory_space<any>> -> memref<128xf32, #tpu.memory_space<any>>
    %c0_i32_11 = arith.constant 0 : i32
    %27 = tpu.memref_slice %arg3[%c3_i32_9, %c0_i32_11] : memref<32x128xf32, #tpu.memory_space<vmem>> -> memref<1x128xf32, #tpu.memory_space<vmem>>
    %28 = tpu.memref_squeeze %27 : memref<1x128xf32, #tpu.memory_space<vmem>> -> memref<128xf32, #tpu.memory_space<vmem>>
    tpu.enqueue_dma source(%26 : memref<128xf32, #tpu.memory_space<any>>) target(%28 : memref<128xf32, #tpu.memory_space<vmem>>) target_semaphore(%arg4 : memref<!tpu.dma_semaphore, #tpu.memory_space<semaphore_mem>>)
    %c4_i32 = arith.constant 4 : i32
    %29 = arith.addi %0, %c4_i32 : i32
    %30 = arith.index_cast %29 : i32 to index
    %31 = memref.load %arg1[%30] : memref<32xi32, #tpu.memory_space<smem>>
    %c4_i32_12 = arith.constant 4 : i32
    %c0_i32_13 = arith.constant 0 : i32
    %32 = tpu.memref_slice %arg2[%31, %c0_i32_13] : memref<64x128xf32, #tpu.memory_space<any>> -> memref<1x128xf32, #tpu.memory_space<any>>
    %33 = tpu.memref_squeeze %32 : memref<1x128xf32, #tpu.memory_space<any>> -> memref<128xf32, #tpu.memory_space<any>>
    %c0_i32_14 = arith.constant 0 : i32
    %34 = tpu.memref_slice %arg3[%c4_i32_12, %c0_i32_14] : memref<32x128xf32, #tpu.memory_space<vmem>> -> memref<1x128xf32, #tpu.memory_space<vmem>>
    %35 = tpu.memref_squeeze %34 : memref<1x128xf32, #tpu.memory_space<vmem>> -> memref<128xf32, #tpu.memory_space<vmem>>
    tpu.enqueue_dma source(%33 : memref<128xf32, #tpu.memory_space<any>>) target(%35 : memref<128xf32, #tpu.memory_space<vmem>>) target_semaphore(%arg4 : memref<!tpu.dma_semaphore, #tpu.memory_space<semaphore_mem>>)
    %c5_i32 = arith.constant 5 : i32
    %36 = arith.addi %0, %c5_i32 : i32
    %37 = arith.index_cast %36 : i32 to index
    %38 = memref.load %arg1[%37] : memref<32xi32, #tpu.memory_space<smem>>
    %c5_i32_15 = arith.constant 5 : i32
    %c0_i32_16 = arith.constant 0 : i32
    %39 = tpu.memref_slice %arg2[%38, %c0_i32_16] : memref<64x128xf32, #tpu.memory_space<any>> -> memref<1x128xf32, #tpu.memory_space<any>>
    %40 = tpu.memref_squeeze %39 : memref<1x128xf32, #tpu.memory_space<any>> -> memref<128xf32, #tpu.memory_space<any>>
    %c0_i32_17 = arith.constant 0 : i32
    %41 = tpu.memref_slice %arg3[%c5_i32_15, %c0_i32_17] : memref<32x128xf32, #tpu.memory_space<vmem>> -> memref<1x128xf32, #tpu.memory_space<vmem>>
    %42 = tpu.memref_squeeze %41 : memref<1x128xf32, #tpu.memory_space<vmem>> -> memref<128xf32, #tpu.memory_space<vmem>>
    tpu.enqueue_dma source(%40 : memref<128xf32, #tpu.memory_space<any>>) target(%42 : memref<128xf32, #tpu.memory_space<vmem>>) target_semaphore(%arg4 : memref<!tpu.dma_semaphore, #tpu.memory_space<semaphore_mem>>)
    %c6_i32 = arith.constant 6 : i32
    %43 = arith.addi %0, %c6_i32 : i32
    %44 = arith.index_cast %43 : i32 to index
    %45 = memref.load %arg1[%44] : memref<32xi32, #tpu.memory_space<smem>>
    %c6_i32_18 = arith.constant 6 : i32
    %c0_i32_19 = arith.constant 0 : i32
    %46 = tpu.memref_slice %arg2[%45, %c0_i32_19] : memref<64x128xf32, #tpu.memory_space<any>> -> memref<1x128xf32, #tpu.memory_space<any>>
    %47 = tpu.memref_squeeze %46 : memref<1x128xf32, #tpu.memory_space<any>> -> memref<128xf32, #tpu.memory_space<any>>
    %c0_i32_20 = arith.constant 0 : i32
    %48 = tpu.memref_slice %arg3[%c6_i32_18, %c0_i32_20] : memref<32x128xf32, #tpu.memory_space<vmem>> -> memref<1x128xf32, #tpu.memory_space<vmem>>
    %49 = tpu.memref_squeeze %48 : memref<1x128xf32, #tpu.memory_space<vmem>> -> memref<128xf32, #tpu.memory_space<vmem>>
    tpu.enqueue_dma source(%47 : memref<128xf32, #tpu.memory_space<any>>) target(%49 : memref<128xf32, #tpu.memory_space<vmem>>) target_semaphore(%arg4 : memref<!tpu.dma_semaphore, #tpu.memory_space<semaphore_mem>>)
    %c7_i32 = arith.constant 7 : i32
    %50 = arith.addi %0, %c7_i32 : i32
    %51 = arith.index_cast %50 : i32 to index
    %52 = memref.load %arg1[%51] : memref<32xi32, #tpu.memory_space<smem>>
    %c7_i32_21 = arith.constant 7 : i32
    %c0_i32_22 = arith.constant 0 : i32
    %53 = tpu.memref_slice %arg2[%52, %c0_i32_22] : memref<64x128xf32, #tpu.memory_space<any>> -> memref<1x128xf32, #tpu.memory_space<any>>
    %54 = tpu.memref_squeeze %53 : memref<1x128xf32, #tpu.memory_space<any>> -> memref<128xf32, #tpu.memory_space<any>>
    %c0_i32_23 = arith.constant 0 : i32
    %55 = tpu.memref_slice %arg3[%c7_i32_21, %c0_i32_23] : memref<32x128xf32, #tpu.memory_space<vmem>> -> memref<1x128xf32, #tpu.memory_space<vmem>>
    %56 = tpu.memref_squeeze %55 : memref<1x128xf32, #tpu.memory_space<vmem>> -> memref<128xf32, #tpu.memory_space<vmem>>
    tpu.enqueue_dma source(%54 : memref<128xf32, #tpu.memory_space<any>>) target(%56 : memref<128xf32, #tpu.memory_space<vmem>>) target_semaphore(%arg4 : memref<!tpu.dma_semaphore, #tpu.memory_space<semaphore_mem>>)
    %c8_i32 = arith.constant 8 : i32
    %57 = arith.addi %0, %c8_i32 : i32
    %58 = arith.index_cast %57 : i32 to index
    %59 = memref.load %arg1[%58] : memref<32xi32, #tpu.memory_space<smem>>
    %c8_i32_24 = arith.constant 8 : i32
    %c0_i32_25 = arith.constant 0 : i32
    %60 = tpu.memref_slice %arg2[%59, %c0_i32_25] : memref<64x128xf32, #tpu.memory_space<any>> -> memref<1x128xf32, #tpu.memory_space<any>>
    %61 = tpu.memref_squeeze %60 : memref<1x128xf32, #tpu.memory_space<any>> -> memref<128xf32, #tpu.memory_space<any>>
    %c0_i32_26 = arith.constant 0 : i32
    %62 = tpu.memref_slice %arg3[%c8_i32_24, %c0_i32_26] : memref<32x128xf32, #tpu.memory_space<vmem>> -> memref<1x128xf32, #tpu.memory_space<vmem>>
    %63 = tpu.memref_squeeze %62 : memref<1x128xf32, #tpu.memory_space<vmem>> -> memref<128xf32, #tpu.memory_space<vmem>>
    tpu.enqueue_dma source(%61 : memref<128xf32, #tpu.memory_space<any>>) target(%63 : memref<128xf32, #tpu.memory_space<vmem>>) target_semaphore(%arg4 : memref<!tpu.dma_semaphore, #tpu.memory_space<semaphore_mem>>)
    %c9_i32 = arith.constant 9 : i32
    %64 = arith.addi %0, %c9_i32 : i32
    %65 = arith.index_cast %64 : i32 to index
    %66 = memref.load %arg1[%65] : memref<32xi32, #tpu.memory_space<smem>>
    %c9_i32_27 = arith.constant 9 : i32
    %c0_i32_28 = arith.constant 0 : i32
    %67 = tpu.memref_slice %arg2[%66, %c0_i32_28] : memref<64x128xf32, #tpu.memory_space<any>> -> memref<1x128xf32, #tpu.memory_space<any>>
    %68 = tpu.memref_squeeze %67 : memref<1x128xf32, #tpu.memory_space<any>> -> memref<128xf32, #tpu.memory_space<any>>
    %c0_i32_29 = arith.constant 0 : i32
    %69 = tpu.memref_slice %arg3[%c9_i32_27, %c0_i32_29] : memref<32x128xf32, #tpu.memory_space<vmem>> -> memref<1x128xf32, #tpu.memory_space<vmem>>
    %70 = tpu.memref_squeeze %69 : memref<1x128xf32, #tpu.memory_space<vmem>> -> memref<128xf32, #tpu.memory_space<vmem>>
    tpu.enqueue_dma source(%68 : memref<128xf32, #tpu.memory_space<any>>) target(%70 : memref<128xf32, #tpu.memory_space<vmem>>) target_semaphore(%arg4 : memref<!tpu.dma_semaphore, #tpu.memory_space<semaphore_mem>>)
    %c10_i32 = arith.constant 10 : i32
    %71 = arith.addi %0, %c10_i32 : i32
    %72 = arith.index_cast %71 : i32 to index
    %73 = memref.load %arg1[%72] : memref<32xi32, #tpu.memory_space<smem>>
    %c10_i32_30 = arith.constant 10 : i32
    %c0_i32_31 = arith.constant 0 : i32
    %74 = tpu.memref_slice %arg2[%73, %c0_i32_31] : memref<64x128xf32, #tpu.memory_space<any>> -> memref<1x128xf32, #tpu.memory_space<any>>
    %75 = tpu.memref_squeeze %74 : memref<1x128xf32, #tpu.memory_space<any>> -> memref<128xf32, #tpu.memory_space<any>>
    %c0_i32_32 = arith.constant 0 : i32
    %76 = tpu.memref_slice %arg3[%c10_i32_30, %c0_i32_32] : memref<32x128xf32, #tpu.memory_space<vmem>> -> memref<1x128xf32, #tpu.memory_space<vmem>>
    %77 = tpu.memref_squeeze %76 : memref<1x128xf32, #tpu.memory_space<vmem>> -> memref<128xf32, #tpu.memory_space<vmem>>
    tpu.enqueue_dma source(%75 : memref<128xf32, #tpu.memory_space<any>>) target(%77 : memref<128xf32, #tpu.memory_space<vmem>>) target_semaphore(%arg4 : memref<!tpu.dma_semaphore, #tpu.memory_space<semaphore_mem>>)
    %c11_i32 = arith.constant 11 : i32
    %78 = arith.addi %0, %c11_i32 : i32
    %79 = arith.index_cast %78 : i32 to index
    %80 = memref.load %arg1[%79] : memref<32xi32, #tpu.memory_space<smem>>
    %c11_i32_33 = arith.constant 11 : i32
    %c0_i32_34 = arith.constant 0 : i32
    %81 = tpu.memref_slice %arg2[%80, %c0_i32_34] : memref<64x128xf32, #tpu.memory_space<any>> -> memref<1x128xf32, #tpu.memory_space<any>>
    %82 = tpu.memref_squeeze %81 : memref<1x128xf32, #tpu.memory_space<any>> -> memref<128xf32, #tpu.memory_space<any>>
    %c0_i32_35 = arith.constant 0 : i32
    %83 = tpu.memref_slice %arg3[%c11_i32_33, %c0_i32_35] : memref<32x128xf32, #tpu.memory_space<vmem>> -> memref<1x128xf32, #tpu.memory_space<vmem>>
    %84 = tpu.memref_squeeze %83 : memref<1x128xf32, #tpu.memory_space<vmem>> -> memref<128xf32, #tpu.memory_space<vmem>>
    tpu.enqueue_dma source(%82 : memref<128xf32, #tpu.memory_space<any>>) target(%84 : memref<128xf32, #tpu.memory_space<vmem>>) target_semaphore(%arg4 : memref<!tpu.dma_semaphore, #tpu.memory_space<semaphore_mem>>)
    %c12_i32 = arith.constant 12 : i32
    %85 = arith.addi %0, %c12_i32 : i32
    %86 = arith.index_cast %85 : i32 to index
    %87 = memref.load %arg1[%86] : memref<32xi32, #tpu.memory_space<smem>>
    %c12_i32_36 = arith.constant 12 : i32
    %c0_i32_37 = arith.constant 0 : i32
    %88 = tpu.memref_slice %arg2[%87, %c0_i32_37] : memref<64x128xf32, #tpu.memory_space<any>> -> memref<1x128xf32, #tpu.memory_space<any>>
    %89 = tpu.memref_squeeze %88 : memref<1x128xf32, #tpu.memory_space<any>> -> memref<128xf32, #tpu.memory_space<any>>
    %c0_i32_38 = arith.constant 0 : i32
    %90 = tpu.memref_slice %arg3[%c12_i32_36, %c0_i32_38] : memref<32x128xf32, #tpu.memory_space<vmem>> -> memref<1x128xf32, #tpu.memory_space<vmem>>
    %91 = tpu.memref_squeeze %90 : memref<1x128xf32, #tpu.memory_space<vmem>> -> memref<128xf32, #tpu.memory_space<vmem>>
    tpu.enqueue_dma source(%89 : memref<128xf32, #tpu.memory_space<any>>) target(%91 : memref<128xf32, #tpu.memory_space<vmem>>) target_semaphore(%arg4 : memref<!tpu.dma_semaphore, #tpu.memory_space<semaphore_mem>>)
    %c13_i32 = arith.constant 13 : i32
    %92 = arith.addi %0, %c13_i32 : i32
    %93 = arith.index_cast %92 : i32 to index
    %94 = memref.load %arg1[%93] : memref<32xi32, #tpu.memory_space<smem>>
    %c13_i32_39 = arith.constant 13 : i32
    %c0_i32_40 = arith.constant 0 : i32
    %95 = tpu.memref_slice %arg2[%94, %c0_i32_40] : memref<64x128xf32, #tpu.memory_space<any>> -> memref<1x128xf32, #tpu.memory_space<any>>
    %96 = tpu.memref_squeeze %95 : memref<1x128xf32, #tpu.memory_space<any>> -> memref<128xf32, #tpu.memory_space<any>>
    %c0_i32_41 = arith.constant 0 : i32
    %97 = tpu.memref_slice %arg3[%c13_i32_39, %c0_i32_41] : memref<32x128xf32, #tpu.memory_space<vmem>> -> memref<1x128xf32, #tpu.memory_space<vmem>>
    %98 = tpu.memref_squeeze %97 : memref<1x128xf32, #tpu.memory_space<vmem>> -> memref<128xf32, #tpu.memory_space<vmem>>
    tpu.enqueue_dma source(%96 : memref<128xf32, #tpu.memory_space<any>>) target(%98 : memref<128xf32, #tpu.memory_space<vmem>>) target_semaphore(%arg4 : memref<!tpu.dma_semaphore, #tpu.memory_space<semaphore_mem>>)
    %c14_i32 = arith.constant 14 : i32
    %99 = arith.addi %0, %c14_i32 : i32
    %100 = arith.index_cast %99 : i32 to index
    %101 = memref.load %arg1[%100] : memref<32xi32, #tpu.memory_space<smem>>
    %c14_i32_42 = arith.constant 14 : i32
    %c0_i32_43 = arith.constant 0 : i32
    %102 = tpu.memref_slice %arg2[%101, %c0_i32_43] : memref<64x128xf32, #tpu.memory_space<any>> -> memref<1x128xf32, #tpu.memory_space<any>>
    %103 = tpu.memref_squeeze %102 : memref<1x128xf32, #tpu.memory_space<any>> -> memref<128xf32, #tpu.memory_space<any>>
    %c0_i32_44 = arith.constant 0 : i32
    %104 = tpu.memref_slice %arg3[%c14_i32_42, %c0_i32_44] : memref<32x128xf32, #tpu.memory_space<vmem>> -> memref<1x128xf32, #tpu.memory_space<vmem>>
    %105 = tpu.memref_squeeze %104 : memref<1x128xf32, #tpu.memory_space<vmem>> -> memref<128xf32, #tpu.memory_space<vmem>>
    tpu.enqueue_dma source(%103 : memref<128xf32, #tpu.memory_space<any>>) target(%105 : memref<128xf32, #tpu.memory_space<vmem>>) target_semaphore(%arg4 : memref<!tpu.dma_semaphore, #tpu.memory_space<semaphore_mem>>)
    %c15_i32 = arith.constant 15 : i32
    %106 = arith.addi %0, %c15_i32 : i32
    %107 = arith.index_cast %106 : i32 to index
    %108 = memref.load %arg1[%107] : memref<32xi32, #tpu.memory_space<smem>>
    %c15_i32_45 = arith.constant 15 : i32
    %c0_i32_46 = arith.constant 0 : i32
    %109 = tpu.memref_slice %arg2[%108, %c0_i32_46] : memref<64x128xf32, #tpu.memory_space<any>> -> memref<1x128xf32, #tpu.memory_space<any>>
    %110 = tpu.memref_squeeze %109 : memref<1x128xf32, #tpu.memory_space<any>> -> memref<128xf32, #tpu.memory_space<any>>
    %c0_i32_47 = arith.constant 0 : i32
    %111 = tpu.memref_slice %arg3[%c15_i32_45, %c0_i32_47] : memref<32x128xf32, #tpu.memory_space<vmem>> -> memref<1x128xf32, #tpu.memory_space<vmem>>
    %112 = tpu.memref_squeeze %111 : memref<1x128xf32, #tpu.memory_space<vmem>> -> memref<128xf32, #tpu.memory_space<vmem>>
    tpu.enqueue_dma source(%110 : memref<128xf32, #tpu.memory_space<any>>) target(%112 : memref<128xf32, #tpu.memory_space<vmem>>) target_semaphore(%arg4 : memref<!tpu.dma_semaphore, #tpu.memory_space<semaphore_mem>>)
    %c16_i32 = arith.constant 16 : i32
    %113 = arith.addi %0, %c16_i32 : i32
    %114 = arith.index_cast %113 : i32 to index
    %115 = memref.load %arg1[%114] : memref<32xi32, #tpu.memory_space<smem>>
    %c16_i32_48 = arith.constant 16 : i32
    %c0_i32_49 = arith.constant 0 : i32
    %116 = tpu.memref_slice %arg2[%115, %c0_i32_49] : memref<64x128xf32, #tpu.memory_space<any>> -> memref<1x128xf32, #tpu.memory_space<any>>
    %117 = tpu.memref_squeeze %116 : memref<1x128xf32, #tpu.memory_space<any>> -> memref<128xf32, #tpu.memory_space<any>>
    %c0_i32_50 = arith.constant 0 : i32
    %118 = tpu.memref_slice %arg3[%c16_i32_48, %c0_i32_50] : memref<32x128xf32, #tpu.memory_space<vmem>> -> memref<1x128xf32, #tpu.memory_space<vmem>>
    %119 = tpu.memref_squeeze %118 : memref<1x128xf32, #tpu.memory_space<vmem>> -> memref<128xf32, #tpu.memory_space<vmem>>
    tpu.enqueue_dma source(%117 : memref<128xf32, #tpu.memory_space<any>>) target(%119 : memref<128xf32, #tpu.memory_space<vmem>>) target_semaphore(%arg4 : memref<!tpu.dma_semaphore, #tpu.memory_space<semaphore_mem>>)
    %c17_i32 = arith.constant 17 : i32
    %120 = arith.addi %0, %c17_i32 : i32
    %121 = arith.index_cast %120 : i32 to index
    %122 = memref.load %arg1[%121] : memref<32xi32, #tpu.memory_space<smem>>
    %c17_i32_51 = arith.constant 17 : i32
    %c0_i32_52 = arith.constant 0 : i32
    %123 = tpu.memref_slice %arg2[%122, %c0_i32_52] : memref<64x128xf32, #tpu.memory_space<any>> -> memref<1x128xf32, #tpu.memory_space<any>>
    %124 = tpu.memref_squeeze %123 : memref<1x128xf32, #tpu.memory_space<any>> -> memref<128xf32, #tpu.memory_space<any>>
    %c0_i32_53 = arith.constant 0 : i32
    %125 = tpu.memref_slice %arg3[%c17_i32_51, %c0_i32_53] : memref<32x128xf32, #tpu.memory_space<vmem>> -> memref<1x128xf32, #tpu.memory_space<vmem>>
    %126 = tpu.memref_squeeze %125 : memref<1x128xf32, #tpu.memory_space<vmem>> -> memref<128xf32, #tpu.memory_space<vmem>>
    tpu.enqueue_dma source(%124 : memref<128xf32, #tpu.memory_space<any>>) target(%126 : memref<128xf32, #tpu.memory_space<vmem>>) target_semaphore(%arg4 : memref<!tpu.dma_semaphore, #tpu.memory_space<semaphore_mem>>)
    %c18_i32 = arith.constant 18 : i32
    %127 = arith.addi %0, %c18_i32 : i32
    %128 = arith.index_cast %127 : i32 to index
    %129 = memref.load %arg1[%128] : memref<32xi32, #tpu.memory_space<smem>>
    %c18_i32_54 = arith.constant 18 : i32
    %c0_i32_55 = arith.constant 0 : i32
    %130 = tpu.memref_slice %arg2[%129, %c0_i32_55] : memref<64x128xf32, #tpu.memory_space<any>> -> memref<1x128xf32, #tpu.memory_space<any>>
    %131 = tpu.memref_squeeze %130 : memref<1x128xf32, #tpu.memory_space<any>> -> memref<128xf32, #tpu.memory_space<any>>
    %c0_i32_56 = arith.constant 0 : i32
    %132 = tpu.memref_slice %arg3[%c18_i32_54, %c0_i32_56] : memref<32x128xf32, #tpu.memory_space<vmem>> -> memref<1x128xf32, #tpu.memory_space<vmem>>
    %133 = tpu.memref_squeeze %132 : memref<1x128xf32, #tpu.memory_space<vmem>> -> memref<128xf32, #tpu.memory_space<vmem>>
    tpu.enqueue_dma source(%131 : memref<128xf32, #tpu.memory_space<any>>) target(%133 : memref<128xf32, #tpu.memory_space<vmem>>) target_semaphore(%arg4 : memref<!tpu.dma_semaphore, #tpu.memory_space<semaphore_mem>>)
    %c19_i32 = arith.constant 19 : i32
    %134 = arith.addi %0, %c19_i32 : i32
    %135 = arith.index_cast %134 : i32 to index
    %136 = memref.load %arg1[%135] : memref<32xi32, #tpu.memory_space<smem>>
    %c19_i32_57 = arith.constant 19 : i32
    %c0_i32_58 = arith.constant 0 : i32
    %137 = tpu.memref_slice %arg2[%136, %c0_i32_58] : memref<64x128xf32, #tpu.memory_space<any>> -> memref<1x128xf32, #tpu.memory_space<any>>
    %138 = tpu.memref_squeeze %137 : memref<1x128xf32, #tpu.memory_space<any>> -> memref<128xf32, #tpu.memory_space<any>>
    %c0_i32_59 = arith.constant 0 : i32
    %139 = tpu.memref_slice %arg3[%c19_i32_57, %c0_i32_59] : memref<32x128xf32, #tpu.memory_space<vmem>> -> memref<1x128xf32, #tpu.memory_space<vmem>>
    %140 = tpu.memref_squeeze %139 : memref<1x128xf32, #tpu.memory_space<vmem>> -> memref<128xf32, #tpu.memory_space<vmem>>
    tpu.enqueue_dma source(%138 : memref<128xf32, #tpu.memory_space<any>>) target(%140 : memref<128xf32, #tpu.memory_space<vmem>>) target_semaphore(%arg4 : memref<!tpu.dma_semaphore, #tpu.memory_space<semaphore_mem>>)
    %c20_i32 = arith.constant 20 : i32
    %141 = arith.addi %0, %c20_i32 : i32
    %142 = arith.index_cast %141 : i32 to index
    %143 = memref.load %arg1[%142] : memref<32xi32, #tpu.memory_space<smem>>
    %c20_i32_60 = arith.constant 20 : i32
    %c0_i32_61 = arith.constant 0 : i32
    %144 = tpu.memref_slice %arg2[%143, %c0_i32_61] : memref<64x128xf32, #tpu.memory_space<any>> -> memref<1x128xf32, #tpu.memory_space<any>>
    %145 = tpu.memref_squeeze %144 : memref<1x128xf32, #tpu.memory_space<any>> -> memref<128xf32, #tpu.memory_space<any>>
    %c0_i32_62 = arith.constant 0 : i32
    %146 = tpu.memref_slice %arg3[%c20_i32_60, %c0_i32_62] : memref<32x128xf32, #tpu.memory_space<vmem>> -> memref<1x128xf32, #tpu.memory_space<vmem>>
    %147 = tpu.memref_squeeze %146 : memref<1x128xf32, #tpu.memory_space<vmem>> -> memref<128xf32, #tpu.memory_space<vmem>>
    tpu.enqueue_dma source(%145 : memref<128xf32, #tpu.memory_space<any>>) target(%147 : memref<128xf32, #tpu.memory_space<vmem>>) target_semaphore(%arg4 : memref<!tpu.dma_semaphore, #tpu.memory_space<semaphore_mem>>)
    %c21_i32 = arith.constant 21 : i32
    %148 = arith.addi %0, %c21_i32 : i32
    %149 = arith.index_cast %148 : i32 to index
    %150 = memref.load %arg1[%149] : memref<32xi32, #tpu.memory_space<smem>>
    %c21_i32_63 = arith.constant 21 : i32
    %c0_i32_64 = arith.constant 0 : i32
    %151 = tpu.memref_slice %arg2[%150, %c0_i32_64] : memref<64x128xf32, #tpu.memory_space<any>> -> memref<1x128xf32, #tpu.memory_space<any>>
    %152 = tpu.memref_squeeze %151 : memref<1x128xf32, #tpu.memory_space<any>> -> memref<128xf32, #tpu.memory_space<any>>
    %c0_i32_65 = arith.constant 0 : i32
    %153 = tpu.memref_slice %arg3[%c21_i32_63, %c0_i32_65] : memref<32x128xf32, #tpu.memory_space<vmem>> -> memref<1x128xf32, #tpu.memory_space<vmem>>
    %154 = tpu.memref_squeeze %153 : memref<1x128xf32, #tpu.memory_space<vmem>> -> memref<128xf32, #tpu.memory_space<vmem>>
    tpu.enqueue_dma source(%152 : memref<128xf32, #tpu.memory_space<any>>) target(%154 : memref<128xf32, #tpu.memory_space<vmem>>) target_semaphore(%arg4 : memref<!tpu.dma_semaphore, #tpu.memory_space<semaphore_mem>>)
    %c22_i32 = arith.constant 22 : i32
    %155 = arith.addi %0, %c22_i32 : i32
    %156 = arith.index_cast %155 : i32 to index
    %157 = memref.load %arg1[%156] : memref<32xi32, #tpu.memory_space<smem>>
    %c22_i32_66 = arith.constant 22 : i32
    %c0_i32_67 = arith.constant 0 : i32
    %158 = tpu.memref_slice %arg2[%157, %c0_i32_67] : memref<64x128xf32, #tpu.memory_space<any>> -> memref<1x128xf32, #tpu.memory_space<any>>
    %159 = tpu.memref_squeeze %158 : memref<1x128xf32, #tpu.memory_space<any>> -> memref<128xf32, #tpu.memory_space<any>>
    %c0_i32_68 = arith.constant 0 : i32
    %160 = tpu.memref_slice %arg3[%c22_i32_66, %c0_i32_68] : memref<32x128xf32, #tpu.memory_space<vmem>> -> memref<1x128xf32, #tpu.memory_space<vmem>>
    %161 = tpu.memref_squeeze %160 : memref<1x128xf32, #tpu.memory_space<vmem>> -> memref<128xf32, #tpu.memory_space<vmem>>
    tpu.enqueue_dma source(%159 : memref<128xf32, #tpu.memory_space<any>>) target(%161 : memref<128xf32, #tpu.memory_space<vmem>>) target_semaphore(%arg4 : memref<!tpu.dma_semaphore, #tpu.memory_space<semaphore_mem>>)
    %c23_i32 = arith.constant 23 : i32
    %162 = arith.addi %0, %c23_i32 : i32
    %163 = arith.index_cast %162 : i32 to index
    %164 = memref.load %arg1[%163] : memref<32xi32, #tpu.memory_space<smem>>
    %c23_i32_69 = arith.constant 23 : i32
    %c0_i32_70 = arith.constant 0 : i32
    %165 = tpu.memref_slice %arg2[%164, %c0_i32_70] : memref<64x128xf32, #tpu.memory_space<any>> -> memref<1x128xf32, #tpu.memory_space<any>>
    %166 = tpu.memref_squeeze %165 : memref<1x128xf32, #tpu.memory_space<any>> -> memref<128xf32, #tpu.memory_space<any>>
    %c0_i32_71 = arith.constant 0 : i32
    %167 = tpu.memref_slice %arg3[%c23_i32_69, %c0_i32_71] : memref<32x128xf32, #tpu.memory_space<vmem>> -> memref<1x128xf32, #tpu.memory_space<vmem>>
    %168 = tpu.memref_squeeze %167 : memref<1x128xf32, #tpu.memory_space<vmem>> -> memref<128xf32, #tpu.memory_space<vmem>>
    tpu.enqueue_dma source(%166 : memref<128xf32, #tpu.memory_space<any>>) target(%168 : memref<128xf32, #tpu.memory_space<vmem>>) target_semaphore(%arg4 : memref<!tpu.dma_semaphore, #tpu.memory_space<semaphore_mem>>)
    %c24_i32 = arith.constant 24 : i32
    %169 = arith.addi %0, %c24_i32 : i32
    %170 = arith.index_cast %169 : i32 to index
    %171 = memref.load %arg1[%170] : memref<32xi32, #tpu.memory_space<smem>>
    %c24_i32_72 = arith.constant 24 : i32
    %c0_i32_73 = arith.constant 0 : i32
    %172 = tpu.memref_slice %arg2[%171, %c0_i32_73] : memref<64x128xf32, #tpu.memory_space<any>> -> memref<1x128xf32, #tpu.memory_space<any>>
    %173 = tpu.memref_squeeze %172 : memref<1x128xf32, #tpu.memory_space<any>> -> memref<128xf32, #tpu.memory_space<any>>
    %c0_i32_74 = arith.constant 0 : i32
    %174 = tpu.memref_slice %arg3[%c24_i32_72, %c0_i32_74] : memref<32x128xf32, #tpu.memory_space<vmem>> -> memref<1x128xf32, #tpu.memory_space<vmem>>
    %175 = tpu.memref_squeeze %174 : memref<1x128xf32, #tpu.memory_space<vmem>> -> memref<128xf32, #tpu.memory_space<vmem>>
    tpu.enqueue_dma source(%173 : memref<128xf32, #tpu.memory_space<any>>) target(%175 : memref<128xf32, #tpu.memory_space<vmem>>) target_semaphore(%arg4 : memref<!tpu.dma_semaphore, #tpu.memory_space<semaphore_mem>>)
    %c25_i32 = arith.constant 25 : i32
    %176 = arith.addi %0, %c25_i32 : i32
    %177 = arith.index_cast %176 : i32 to index
    %178 = memref.load %arg1[%177] : memref<32xi32, #tpu.memory_space<smem>>
    %c25_i32_75 = arith.constant 25 : i32
    %c0_i32_76 = arith.constant 0 : i32
    %179 = tpu.memref_slice %arg2[%178, %c0_i32_76] : memref<64x128xf32, #tpu.memory_space<any>> -> memref<1x128xf32, #tpu.memory_space<any>>
    %180 = tpu.memref_squeeze %179 : memref<1x128xf32, #tpu.memory_space<any>> -> memref<128xf32, #tpu.memory_space<any>>
    %c0_i32_77 = arith.constant 0 : i32
    %181 = tpu.memref_slice %arg3[%c25_i32_75, %c0_i32_77] : memref<32x128xf32, #tpu.memory_space<vmem>> -> memref<1x128xf32, #tpu.memory_space<vmem>>
    %182 = tpu.memref_squeeze %181 : memref<1x128xf32, #tpu.memory_space<vmem>> -> memref<128xf32, #tpu.memory_space<vmem>>
    tpu.enqueue_dma source(%180 : memref<128xf32, #tpu.memory_space<any>>) target(%182 : memref<128xf32, #tpu.memory_space<vmem>>) target_semaphore(%arg4 : memref<!tpu.dma_semaphore, #tpu.memory_space<semaphore_mem>>)
    %c26_i32 = arith.constant 26 : i32
    %183 = arith.addi %0, %c26_i32 : i32
    %184 = arith.index_cast %183 : i32 to index
    %185 = memref.load %arg1[%184] : memref<32xi32, #tpu.memory_space<smem>>
    %c26_i32_78 = arith.constant 26 : i32
    %c0_i32_79 = arith.constant 0 : i32
    %186 = tpu.memref_slice %arg2[%185, %c0_i32_79] : memref<64x128xf32, #tpu.memory_space<any>> -> memref<1x128xf32, #tpu.memory_space<any>>
    %187 = tpu.memref_squeeze %186 : memref<1x128xf32, #tpu.memory_space<any>> -> memref<128xf32, #tpu.memory_space<any>>
    %c0_i32_80 = arith.constant 0 : i32
    %188 = tpu.memref_slice %arg3[%c26_i32_78, %c0_i32_80] : memref<32x128xf32, #tpu.memory_space<vmem>> -> memref<1x128xf32, #tpu.memory_space<vmem>>
    %189 = tpu.memref_squeeze %188 : memref<1x128xf32, #tpu.memory_space<vmem>> -> memref<128xf32, #tpu.memory_space<vmem>>
    tpu.enqueue_dma source(%187 : memref<128xf32, #tpu.memory_space<any>>) target(%189 : memref<128xf32, #tpu.memory_space<vmem>>) target_semaphore(%arg4 : memref<!tpu.dma_semaphore, #tpu.memory_space<semaphore_mem>>)
    %c27_i32 = arith.constant 27 : i32
    %190 = arith.addi %0, %c27_i32 : i32
    %191 = arith.index_cast %190 : i32 to index
    %192 = memref.load %arg1[%191] : memref<32xi32, #tpu.memory_space<smem>>
    %c27_i32_81 = arith.constant 27 : i32
    %c0_i32_82 = arith.constant 0 : i32
    %193 = tpu.memref_slice %arg2[%192, %c0_i32_82] : memref<64x128xf32, #tpu.memory_space<any>> -> memref<1x128xf32, #tpu.memory_space<any>>
    %194 = tpu.memref_squeeze %193 : memref<1x128xf32, #tpu.memory_space<any>> -> memref<128xf32, #tpu.memory_space<any>>
    %c0_i32_83 = arith.constant 0 : i32
    %195 = tpu.memref_slice %arg3[%c27_i32_81, %c0_i32_83] : memref<32x128xf32, #tpu.memory_space<vmem>> -> memref<1x128xf32, #tpu.memory_space<vmem>>
    %196 = tpu.memref_squeeze %195 : memref<1x128xf32, #tpu.memory_space<vmem>> -> memref<128xf32, #tpu.memory_space<vmem>>
    tpu.enqueue_dma source(%194 : memref<128xf32, #tpu.memory_space<any>>) target(%196 : memref<128xf32, #tpu.memory_space<vmem>>) target_semaphore(%arg4 : memref<!tpu.dma_semaphore, #tpu.memory_space<semaphore_mem>>)
    %c28_i32 = arith.constant 28 : i32
    %197 = arith.addi %0, %c28_i32 : i32
    %198 = arith.index_cast %197 : i32 to index
    %199 = memref.load %arg1[%198] : memref<32xi32, #tpu.memory_space<smem>>
    %c28_i32_84 = arith.constant 28 : i32
    %c0_i32_85 = arith.constant 0 : i32
    %200 = tpu.memref_slice %arg2[%199, %c0_i32_85] : memref<64x128xf32, #tpu.memory_space<any>> -> memref<1x128xf32, #tpu.memory_space<any>>
    %201 = tpu.memref_squeeze %200 : memref<1x128xf32, #tpu.memory_space<any>> -> memref<128xf32, #tpu.memory_space<any>>
    %c0_i32_86 = arith.constant 0 : i32
    %202 = tpu.memref_slice %arg3[%c28_i32_84, %c0_i32_86] : memref<32x128xf32, #tpu.memory_space<vmem>> -> memref<1x128xf32, #tpu.memory_space<vmem>>
    %203 = tpu.memref_squeeze %202 : memref<1x128xf32, #tpu.memory_space<vmem>> -> memref<128xf32, #tpu.memory_space<vmem>>
    tpu.enqueue_dma source(%201 : memref<128xf32, #tpu.memory_space<any>>) target(%203 : memref<128xf32, #tpu.memory_space<vmem>>) target_semaphore(%arg4 : memref<!tpu.dma_semaphore, #tpu.memory_space<semaphore_mem>>)
    %c29_i32 = arith.constant 29 : i32
    %204 = arith.addi %0, %c29_i32 : i32
    %205 = arith.index_cast %204 : i32 to index
    %206 = memref.load %arg1[%205] : memref<32xi32, #tpu.memory_space<smem>>
    %c29_i32_87 = arith.constant 29 : i32
    %c0_i32_88 = arith.constant 0 : i32
    %207 = tpu.memref_slice %arg2[%206, %c0_i32_88] : memref<64x128xf32, #tpu.memory_space<any>> -> memref<1x128xf32, #tpu.memory_space<any>>
    %208 = tpu.memref_squeeze %207 : memref<1x128xf32, #tpu.memory_space<any>> -> memref<128xf32, #tpu.memory_space<any>>
    %c0_i32_89 = arith.constant 0 : i32
    %209 = tpu.memref_slice %arg3[%c29_i32_87, %c0_i32_89] : memref<32x128xf32, #tpu.memory_space<vmem>> -> memref<1x128xf32, #tpu.memory_space<vmem>>
    %210 = tpu.memref_squeeze %209 : memref<1x128xf32, #tpu.memory_space<vmem>> -> memref<128xf32, #tpu.memory_space<vmem>>
    tpu.enqueue_dma source(%208 : memref<128xf32, #tpu.memory_space<any>>) target(%210 : memref<128xf32, #tpu.memory_space<vmem>>) target_semaphore(%arg4 : memref<!tpu.dma_semaphore, #tpu.memory_space<semaphore_mem>>)
    %c30_i32 = arith.constant 30 : i32
    %211 = arith.addi %0, %c30_i32 : i32
    %212 = arith.index_cast %211 : i32 to index
    %213 = memref.load %arg1[%212] : memref<32xi32, #tpu.memory_space<smem>>
    %c30_i32_90 = arith.constant 30 : i32
    %c0_i32_91 = arith.constant 0 : i32
    %214 = tpu.memref_slice %arg2[%213, %c0_i32_91] : memref<64x128xf32, #tpu.memory_space<any>> -> memref<1x128xf32, #tpu.memory_space<any>>
    %215 = tpu.memref_squeeze %214 : memref<1x128xf32, #tpu.memory_space<any>> -> memref<128xf32, #tpu.memory_space<any>>
    %c0_i32_92 = arith.constant 0 : i32
    %216 = tpu.memref_slice %arg3[%c30_i32_90, %c0_i32_92] : memref<32x128xf32, #tpu.memory_space<vmem>> -> memref<1x128xf32, #tpu.memory_space<vmem>>
    %217 = tpu.memref_squeeze %216 : memref<1x128xf32, #tpu.memory_space<vmem>> -> memref<128xf32, #tpu.memory_space<vmem>>
    tpu.enqueue_dma source(%215 : memref<128xf32, #tpu.memory_space<any>>) target(%217 : memref<128xf32, #tpu.memory_space<vmem>>) target_semaphore(%arg4 : memref<!tpu.dma_semaphore, #tpu.memory_space<semaphore_mem>>)
    %c31_i32 = arith.constant 31 : i32
    %218 = arith.addi %0, %c31_i32 : i32
    %219 = arith.index_cast %218 : i32 to index
    %220 = memref.load %arg1[%219] : memref<32xi32, #tpu.memory_space<smem>>
    %c31_i32_93 = arith.constant 31 : i32
    %c0_i32_94 = arith.constant 0 : i32
    %221 = tpu.memref_slice %arg2[%220, %c0_i32_94] : memref<64x128xf32, #tpu.memory_space<any>> -> memref<1x128xf32, #tpu.memory_space<any>>
    %222 = tpu.memref_squeeze %221 : memref<1x128xf32, #tpu.memory_space<any>> -> memref<128xf32, #tpu.memory_space<any>>
    %c0_i32_95 = arith.constant 0 : i32
    %223 = tpu.memref_slice %arg3[%c31_i32_93, %c0_i32_95] : memref<32x128xf32, #tpu.memory_space<vmem>> -> memref<1x128xf32, #tpu.memory_space<vmem>>
    %224 = tpu.memref_squeeze %223 : memref<1x128xf32, #tpu.memory_space<vmem>> -> memref<128xf32, #tpu.memory_space<vmem>>
    tpu.enqueue_dma source(%222 : memref<128xf32, #tpu.memory_space<any>>) target(%224 : memref<128xf32, #tpu.memory_space<vmem>>) target_semaphore(%arg4 : memref<!tpu.dma_semaphore, #tpu.memory_space<semaphore_mem>>)
    %c0_i32_96 = arith.constant 0 : i32
    %c0_i32_97 = arith.constant 0 : i32
    %225 = tpu.memref_slice %arg2[%3, %c0_i32_97] : memref<64x128xf32, #tpu.memory_space<any>> -> memref<1x128xf32, #tpu.memory_space<any>>
    %226 = tpu.memref_squeeze %225 : memref<1x128xf32, #tpu.memory_space<any>> -> memref<128xf32, #tpu.memory_space<any>>
    %c0_i32_98 = arith.constant 0 : i32
    %227 = tpu.memref_slice %arg3[%c0_i32_96, %c0_i32_98] : memref<32x128xf32, #tpu.memory_space<vmem>> -> memref<1x128xf32, #tpu.memory_space<vmem>>
    %228 = tpu.memref_squeeze %227 : memref<1x128xf32, #tpu.memory_space<vmem>> -> memref<128xf32, #tpu.memory_space<vmem>>
    tpu.wait_dma2 semaphore(%arg4 : memref<!tpu.dma_semaphore, #tpu.memory_space<semaphore_mem>>) src(%226 : memref<128xf32, #tpu.memory_space<any>>) dst(%228 : memref<128xf32, #tpu.memory_space<vmem>>)
    %c1_i32_99 = arith.constant 1 : i32
    %c0_i32_100 = arith.constant 0 : i32
    %229 = tpu.memref_slice %arg2[%10, %c0_i32_100] : memref<64x128xf32, #tpu.memory_space<any>> -> memref<1x128xf32, #tpu.memory_space<any>>
    %230 = tpu.memref_squeeze %229 : memref<1x128xf32, #tpu.memory_space<any>> -> memref<128xf32, #tpu.memory_space<any>>
    %c0_i32_101 = arith.constant 0 : i32
    %231 = tpu.memref_slice %arg3[%c1_i32_99, %c0_i32_101] : memref<32x128xf32, #tpu.memory_space<vmem>> -> memref<1x128xf32, #tpu.memory_space<vmem>>
    %232 = tpu.memref_squeeze %231 : memref<1x128xf32, #tpu.memory_space<vmem>> -> memref<128xf32, #tpu.memory_space<vmem>>
    tpu.wait_dma2 semaphore(%arg4 : memref<!tpu.dma_semaphore, #tpu.memory_space<semaphore_mem>>) src(%230 : memref<128xf32, #tpu.memory_space<any>>) dst(%232 : memref<128xf32, #tpu.memory_space<vmem>>)
    %c2_i32_102 = arith.constant 2 : i32
    %c0_i32_103 = arith.constant 0 : i32
    %233 = tpu.memref_slice %arg2[%17, %c0_i32_103] : memref<64x128xf32, #tpu.memory_space<any>> -> memref<1x128xf32, #tpu.memory_space<any>>
    %234 = tpu.memref_squeeze %233 : memref<1x128xf32, #tpu.memory_space<any>> -> memref<128xf32, #tpu.memory_space<any>>
    %c0_i32_104 = arith.constant 0 : i32
    %235 = tpu.memref_slice %arg3[%c2_i32_102, %c0_i32_104] : memref<32x128xf32, #tpu.memory_space<vmem>> -> memref<1x128xf32, #tpu.memory_space<vmem>>
    %236 = tpu.memref_squeeze %235 : memref<1x128xf32, #tpu.memory_space<vmem>> -> memref<128xf32, #tpu.memory_space<vmem>>
    tpu.wait_dma2 semaphore(%arg4 : memref<!tpu.dma_semaphore, #tpu.memory_space<semaphore_mem>>) src(%234 : memref<128xf32, #tpu.memory_space<any>>) dst(%236 : memref<128xf32, #tpu.memory_space<vmem>>)
    %c3_i32_105 = arith.constant 3 : i32
    %c0_i32_106 = arith.constant 0 : i32
    %237 = tpu.memref_slice %arg2[%24, %c0_i32_106] : memref<64x128xf32, #tpu.memory_space<any>> -> memref<1x128xf32, #tpu.memory_space<any>>
    %238 = tpu.memref_squeeze %237 : memref<1x128xf32, #tpu.memory_space<any>> -> memref<128xf32, #tpu.memory_space<any>>
    %c0_i32_107 = arith.constant 0 : i32
    %239 = tpu.memref_slice %arg3[%c3_i32_105, %c0_i32_107] : memref<32x128xf32, #tpu.memory_space<vmem>> -> memref<1x128xf32, #tpu.memory_space<vmem>>
    %240 = tpu.memref_squeeze %239 : memref<1x128xf32, #tpu.memory_space<vmem>> -> memref<128xf32, #tpu.memory_space<vmem>>
    tpu.wait_dma2 semaphore(%arg4 : memref<!tpu.dma_semaphore, #tpu.memory_space<semaphore_mem>>) src(%238 : memref<128xf32, #tpu.memory_space<any>>) dst(%240 : memref<128xf32, #tpu.memory_space<vmem>>)
    %c4_i32_108 = arith.constant 4 : i32
    %c0_i32_109 = arith.constant 0 : i32
    %241 = tpu.memref_slice %arg2[%31, %c0_i32_109] : memref<64x128xf32, #tpu.memory_space<any>> -> memref<1x128xf32, #tpu.memory_space<any>>
    %242 = tpu.memref_squeeze %241 : memref<1x128xf32, #tpu.memory_space<any>> -> memref<128xf32, #tpu.memory_space<any>>
    %c0_i32_110 = arith.constant 0 : i32
    %243 = tpu.memref_slice %arg3[%c4_i32_108, %c0_i32_110] : memref<32x128xf32, #tpu.memory_space<vmem>> -> memref<1x128xf32, #tpu.memory_space<vmem>>
    %244 = tpu.memref_squeeze %243 : memref<1x128xf32, #tpu.memory_space<vmem>> -> memref<128xf32, #tpu.memory_space<vmem>>
    tpu.wait_dma2 semaphore(%arg4 : memref<!tpu.dma_semaphore, #tpu.memory_space<semaphore_mem>>) src(%242 : memref<128xf32, #tpu.memory_space<any>>) dst(%244 : memref<128xf32, #tpu.memory_space<vmem>>)
    %c5_i32_111 = arith.constant 5 : i32
    %c0_i32_112 = arith.constant 0 : i32
    %245 = tpu.memref_slice %arg2[%38, %c0_i32_112] : memref<64x128xf32, #tpu.memory_space<any>> -> memref<1x128xf32, #tpu.memory_space<any>>
    %246 = tpu.memref_squeeze %245 : memref<1x128xf32, #tpu.memory_space<any>> -> memref<128xf32, #tpu.memory_space<any>>
    %c0_i32_113 = arith.constant 0 : i32
    %247 = tpu.memref_slice %arg3[%c5_i32_111, %c0_i32_113] : memref<32x128xf32, #tpu.memory_space<vmem>> -> memref<1x128xf32, #tpu.memory_space<vmem>>
    %248 = tpu.memref_squeeze %247 : memref<1x128xf32, #tpu.memory_space<vmem>> -> memref<128xf32, #tpu.memory_space<vmem>>
    tpu.wait_dma2 semaphore(%arg4 : memref<!tpu.dma_semaphore, #tpu.memory_space<semaphore_mem>>) src(%246 : memref<128xf32, #tpu.memory_space<any>>) dst(%248 : memref<128xf32, #tpu.memory_space<vmem>>)
    %c6_i32_114 = arith.constant 6 : i32
    %c0_i32_115 = arith.constant 0 : i32
    %249 = tpu.memref_slice %arg2[%45, %c0_i32_115] : memref<64x128xf32, #tpu.memory_space<any>> -> memref<1x128xf32, #tpu.memory_space<any>>
    %250 = tpu.memref_squeeze %249 : memref<1x128xf32, #tpu.memory_space<any>> -> memref<128xf32, #tpu.memory_space<any>>
    %c0_i32_116 = arith.constant 0 : i32
    %251 = tpu.memref_slice %arg3[%c6_i32_114, %c0_i32_116] : memref<32x128xf32, #tpu.memory_space<vmem>> -> memref<1x128xf32, #tpu.memory_space<vmem>>
    %252 = tpu.memref_squeeze %251 : memref<1x128xf32, #tpu.memory_space<vmem>> -> memref<128xf32, #tpu.memory_space<vmem>>
    tpu.wait_dma2 semaphore(%arg4 : memref<!tpu.dma_semaphore, #tpu.memory_space<semaphore_mem>>) src(%250 : memref<128xf32, #tpu.memory_space<any>>) dst(%252 : memref<128xf32, #tpu.memory_space<vmem>>)
    %c7_i32_117 = arith.constant 7 : i32
    %c0_i32_118 = arith.constant 0 : i32
    %253 = tpu.memref_slice %arg2[%52, %c0_i32_118] : memref<64x128xf32, #tpu.memory_space<any>> -> memref<1x128xf32, #tpu.memory_space<any>>
    %254 = tpu.memref_squeeze %253 : memref<1x128xf32, #tpu.memory_space<any>> -> memref<128xf32, #tpu.memory_space<any>>
    %c0_i32_119 = arith.constant 0 : i32
    %255 = tpu.memref_slice %arg3[%c7_i32_117, %c0_i32_119] : memref<32x128xf32, #tpu.memory_space<vmem>> -> memref<1x128xf32, #tpu.memory_space<vmem>>
    %256 = tpu.memref_squeeze %255 : memref<1x128xf32, #tpu.memory_space<vmem>> -> memref<128xf32, #tpu.memory_space<vmem>>
    tpu.wait_dma2 semaphore(%arg4 : memref<!tpu.dma_semaphore, #tpu.memory_space<semaphore_mem>>) src(%254 : memref<128xf32, #tpu.memory_space<any>>) dst(%256 : memref<128xf32, #tpu.memory_space<vmem>>)
    %c8_i32_120 = arith.constant 8 : i32
    %c0_i32_121 = arith.constant 0 : i32
    %257 = tpu.memref_slice %arg2[%59, %c0_i32_121] : memref<64x128xf32, #tpu.memory_space<any>> -> memref<1x128xf32, #tpu.memory_space<any>>
    %258 = tpu.memref_squeeze %257 : memref<1x128xf32, #tpu.memory_space<any>> -> memref<128xf32, #tpu.memory_space<any>>
    %c0_i32_122 = arith.constant 0 : i32
    %259 = tpu.memref_slice %arg3[%c8_i32_120, %c0_i32_122] : memref<32x128xf32, #tpu.memory_space<vmem>> -> memref<1x128xf32, #tpu.memory_space<vmem>>
    %260 = tpu.memref_squeeze %259 : memref<1x128xf32, #tpu.memory_space<vmem>> -> memref<128xf32, #tpu.memory_space<vmem>>
    tpu.wait_dma2 semaphore(%arg4 : memref<!tpu.dma_semaphore, #tpu.memory_space<semaphore_mem>>) src(%258 : memref<128xf32, #tpu.memory_space<any>>) dst(%260 : memref<128xf32, #tpu.memory_space<vmem>>)
    %c9_i32_123 = arith.constant 9 : i32
    %c0_i32_124 = arith.constant 0 : i32
    %261 = tpu.memref_slice %arg2[%66, %c0_i32_124] : memref<64x128xf32, #tpu.memory_space<any>> -> memref<1x128xf32, #tpu.memory_space<any>>
    %262 = tpu.memref_squeeze %261 : memref<1x128xf32, #tpu.memory_space<any>> -> memref<128xf32, #tpu.memory_space<any>>
    %c0_i32_125 = arith.constant 0 : i32
    %263 = tpu.memref_slice %arg3[%c9_i32_123, %c0_i32_125] : memref<32x128xf32, #tpu.memory_space<vmem>> -> memref<1x128xf32, #tpu.memory_space<vmem>>
    %264 = tpu.memref_squeeze %263 : memref<1x128xf32, #tpu.memory_space<vmem>> -> memref<128xf32, #tpu.memory_space<vmem>>
    tpu.wait_dma2 semaphore(%arg4 : memref<!tpu.dma_semaphore, #tpu.memory_space<semaphore_mem>>) src(%262 : memref<128xf32, #tpu.memory_space<any>>) dst(%264 : memref<128xf32, #tpu.memory_space<vmem>>)
    %c10_i32_126 = arith.constant 10 : i32
    %c0_i32_127 = arith.constant 0 : i32
    %265 = tpu.memref_slice %arg2[%73, %c0_i32_127] : memref<64x128xf32, #tpu.memory_space<any>> -> memref<1x128xf32, #tpu.memory_space<any>>
    %266 = tpu.memref_squeeze %265 : memref<1x128xf32, #tpu.memory_space<any>> -> memref<128xf32, #tpu.memory_space<any>>
    %c0_i32_128 = arith.constant 0 : i32
    %267 = tpu.memref_slice %arg3[%c10_i32_126, %c0_i32_128] : memref<32x128xf32, #tpu.memory_space<vmem>> -> memref<1x128xf32, #tpu.memory_space<vmem>>
    %268 = tpu.memref_squeeze %267 : memref<1x128xf32, #tpu.memory_space<vmem>> -> memref<128xf32, #tpu.memory_space<vmem>>
    tpu.wait_dma2 semaphore(%arg4 : memref<!tpu.dma_semaphore, #tpu.memory_space<semaphore_mem>>) src(%266 : memref<128xf32, #tpu.memory_space<any>>) dst(%268 : memref<128xf32, #tpu.memory_space<vmem>>)
    %c11_i32_129 = arith.constant 11 : i32
    %c0_i32_130 = arith.constant 0 : i32
    %269 = tpu.memref_slice %arg2[%80, %c0_i32_130] : memref<64x128xf32, #tpu.memory_space<any>> -> memref<1x128xf32, #tpu.memory_space<any>>
    %270 = tpu.memref_squeeze %269 : memref<1x128xf32, #tpu.memory_space<any>> -> memref<128xf32, #tpu.memory_space<any>>
    %c0_i32_131 = arith.constant 0 : i32
    %271 = tpu.memref_slice %arg3[%c11_i32_129, %c0_i32_131] : memref<32x128xf32, #tpu.memory_space<vmem>> -> memref<1x128xf32, #tpu.memory_space<vmem>>
    %272 = tpu.memref_squeeze %271 : memref<1x128xf32, #tpu.memory_space<vmem>> -> memref<128xf32, #tpu.memory_space<vmem>>
    tpu.wait_dma2 semaphore(%arg4 : memref<!tpu.dma_semaphore, #tpu.memory_space<semaphore_mem>>) src(%270 : memref<128xf32, #tpu.memory_space<any>>) dst(%272 : memref<128xf32, #tpu.memory_space<vmem>>)
    %c12_i32_132 = arith.constant 12 : i32
    %c0_i32_133 = arith.constant 0 : i32
    %273 = tpu.memref_slice %arg2[%87, %c0_i32_133] : memref<64x128xf32, #tpu.memory_space<any>> -> memref<1x128xf32, #tpu.memory_space<any>>
    %274 = tpu.memref_squeeze %273 : memref<1x128xf32, #tpu.memory_space<any>> -> memref<128xf32, #tpu.memory_space<any>>
    %c0_i32_134 = arith.constant 0 : i32
    %275 = tpu.memref_slice %arg3[%c12_i32_132, %c0_i32_134] : memref<32x128xf32, #tpu.memory_space<vmem>> -> memref<1x128xf32, #tpu.memory_space<vmem>>
    %276 = tpu.memref_squeeze %275 : memref<1x128xf32, #tpu.memory_space<vmem>> -> memref<128xf32, #tpu.memory_space<vmem>>
    tpu.wait_dma2 semaphore(%arg4 : memref<!tpu.dma_semaphore, #tpu.memory_space<semaphore_mem>>) src(%274 : memref<128xf32, #tpu.memory_space<any>>) dst(%276 : memref<128xf32, #tpu.memory_space<vmem>>)
    %c13_i32_135 = arith.constant 13 : i32
    %c0_i32_136 = arith.constant 0 : i32
    %277 = tpu.memref_slice %arg2[%94, %c0_i32_136] : memref<64x128xf32, #tpu.memory_space<any>> -> memref<1x128xf32, #tpu.memory_space<any>>
    %278 = tpu.memref_squeeze %277 : memref<1x128xf32, #tpu.memory_space<any>> -> memref<128xf32, #tpu.memory_space<any>>
    %c0_i32_137 = arith.constant 0 : i32
    %279 = tpu.memref_slice %arg3[%c13_i32_135, %c0_i32_137] : memref<32x128xf32, #tpu.memory_space<vmem>> -> memref<1x128xf32, #tpu.memory_space<vmem>>
    %280 = tpu.memref_squeeze %279 : memref<1x128xf32, #tpu.memory_space<vmem>> -> memref<128xf32, #tpu.memory_space<vmem>>
    tpu.wait_dma2 semaphore(%arg4 : memref<!tpu.dma_semaphore, #tpu.memory_space<semaphore_mem>>) src(%278 : memref<128xf32, #tpu.memory_space<any>>) dst(%280 : memref<128xf32, #tpu.memory_space<vmem>>)
    %c14_i32_138 = arith.constant 14 : i32
    %c0_i32_139 = arith.constant 0 : i32
    %281 = tpu.memref_slice %arg2[%101, %c0_i32_139] : memref<64x128xf32, #tpu.memory_space<any>> -> memref<1x128xf32, #tpu.memory_space<any>>
    %282 = tpu.memref_squeeze %281 : memref<1x128xf32, #tpu.memory_space<any>> -> memref<128xf32, #tpu.memory_space<any>>
    %c0_i32_140 = arith.constant 0 : i32
    %283 = tpu.memref_slice %arg3[%c14_i32_138, %c0_i32_140] : memref<32x128xf32, #tpu.memory_space<vmem>> -> memref<1x128xf32, #tpu.memory_space<vmem>>
    %284 = tpu.memref_squeeze %283 : memref<1x128xf32, #tpu.memory_space<vmem>> -> memref<128xf32, #tpu.memory_space<vmem>>
    tpu.wait_dma2 semaphore(%arg4 : memref<!tpu.dma_semaphore, #tpu.memory_space<semaphore_mem>>) src(%282 : memref<128xf32, #tpu.memory_space<any>>) dst(%284 : memref<128xf32, #tpu.memory_space<vmem>>)
    %c15_i32_141 = arith.constant 15 : i32
    %c0_i32_142 = arith.constant 0 : i32
    %285 = tpu.memref_slice %arg2[%108, %c0_i32_142] : memref<64x128xf32, #tpu.memory_space<any>> -> memref<1x128xf32, #tpu.memory_space<any>>
    %286 = tpu.memref_squeeze %285 : memref<1x128xf32, #tpu.memory_space<any>> -> memref<128xf32, #tpu.memory_space<any>>
    %c0_i32_143 = arith.constant 0 : i32
    %287 = tpu.memref_slice %arg3[%c15_i32_141, %c0_i32_143] : memref<32x128xf32, #tpu.memory_space<vmem>> -> memref<1x128xf32, #tpu.memory_space<vmem>>
    %288 = tpu.memref_squeeze %287 : memref<1x128xf32, #tpu.memory_space<vmem>> -> memref<128xf32, #tpu.memory_space<vmem>>
    tpu.wait_dma2 semaphore(%arg4 : memref<!tpu.dma_semaphore, #tpu.memory_space<semaphore_mem>>) src(%286 : memref<128xf32, #tpu.memory_space<any>>) dst(%288 : memref<128xf32, #tpu.memory_space<vmem>>)
    %c16_i32_144 = arith.constant 16 : i32
    %c0_i32_145 = arith.constant 0 : i32
    %289 = tpu.memref_slice %arg2[%115, %c0_i32_145] : memref<64x128xf32, #tpu.memory_space<any>> -> memref<1x128xf32, #tpu.memory_space<any>>
    %290 = tpu.memref_squeeze %289 : memref<1x128xf32, #tpu.memory_space<any>> -> memref<128xf32, #tpu.memory_space<any>>
    %c0_i32_146 = arith.constant 0 : i32
    %291 = tpu.memref_slice %arg3[%c16_i32_144, %c0_i32_146] : memref<32x128xf32, #tpu.memory_space<vmem>> -> memref<1x128xf32, #tpu.memory_space<vmem>>
    %292 = tpu.memref_squeeze %291 : memref<1x128xf32, #tpu.memory_space<vmem>> -> memref<128xf32, #tpu.memory_space<vmem>>
    tpu.wait_dma2 semaphore(%arg4 : memref<!tpu.dma_semaphore, #tpu.memory_space<semaphore_mem>>) src(%290 : memref<128xf32, #tpu.memory_space<any>>) dst(%292 : memref<128xf32, #tpu.memory_space<vmem>>)
    %c17_i32_147 = arith.constant 17 : i32
    %c0_i32_148 = arith.constant 0 : i32
    %293 = tpu.memref_slice %arg2[%122, %c0_i32_148] : memref<64x128xf32, #tpu.memory_space<any>> -> memref<1x128xf32, #tpu.memory_space<any>>
    %294 = tpu.memref_squeeze %293 : memref<1x128xf32, #tpu.memory_space<any>> -> memref<128xf32, #tpu.memory_space<any>>
    %c0_i32_149 = arith.constant 0 : i32
    %295 = tpu.memref_slice %arg3[%c17_i32_147, %c0_i32_149] : memref<32x128xf32, #tpu.memory_space<vmem>> -> memref<1x128xf32, #tpu.memory_space<vmem>>
    %296 = tpu.memref_squeeze %295 : memref<1x128xf32, #tpu.memory_space<vmem>> -> memref<128xf32, #tpu.memory_space<vmem>>
    tpu.wait_dma2 semaphore(%arg4 : memref<!tpu.dma_semaphore, #tpu.memory_space<semaphore_mem>>) src(%294 : memref<128xf32, #tpu.memory_space<any>>) dst(%296 : memref<128xf32, #tpu.memory_space<vmem>>)
    %c18_i32_150 = arith.constant 18 : i32
    %c0_i32_151 = arith.constant 0 : i32
    %297 = tpu.memref_slice %arg2[%129, %c0_i32_151] : memref<64x128xf32, #tpu.memory_space<any>> -> memref<1x128xf32, #tpu.memory_space<any>>
    %298 = tpu.memref_squeeze %297 : memref<1x128xf32, #tpu.memory_space<any>> -> memref<128xf32, #tpu.memory_space<any>>
    %c0_i32_152 = arith.constant 0 : i32
    %299 = tpu.memref_slice %arg3[%c18_i32_150, %c0_i32_152] : memref<32x128xf32, #tpu.memory_space<vmem>> -> memref<1x128xf32, #tpu.memory_space<vmem>>
    %300 = tpu.memref_squeeze %299 : memref<1x128xf32, #tpu.memory_space<vmem>> -> memref<128xf32, #tpu.memory_space<vmem>>
    tpu.wait_dma2 semaphore(%arg4 : memref<!tpu.dma_semaphore, #tpu.memory_space<semaphore_mem>>) src(%298 : memref<128xf32, #tpu.memory_space<any>>) dst(%300 : memref<128xf32, #tpu.memory_space<vmem>>)
    %c19_i32_153 = arith.constant 19 : i32
    %c0_i32_154 = arith.constant 0 : i32
    %301 = tpu.memref_slice %arg2[%136, %c0_i32_154] : memref<64x128xf32, #tpu.memory_space<any>> -> memref<1x128xf32, #tpu.memory_space<any>>
    %302 = tpu.memref_squeeze %301 : memref<1x128xf32, #tpu.memory_space<any>> -> memref<128xf32, #tpu.memory_space<any>>
    %c0_i32_155 = arith.constant 0 : i32
    %303 = tpu.memref_slice %arg3[%c19_i32_153, %c0_i32_155] : memref<32x128xf32, #tpu.memory_space<vmem>> -> memref<1x128xf32, #tpu.memory_space<vmem>>
    %304 = tpu.memref_squeeze %303 : memref<1x128xf32, #tpu.memory_space<vmem>> -> memref<128xf32, #tpu.memory_space<vmem>>
    tpu.wait_dma2 semaphore(%arg4 : memref<!tpu.dma_semaphore, #tpu.memory_space<semaphore_mem>>) src(%302 : memref<128xf32, #tpu.memory_space<any>>) dst(%304 : memref<128xf32, #tpu.memory_space<vmem>>)
    %c20_i32_156 = arith.constant 20 : i32
    %c0_i32_157 = arith.constant 0 : i32
    %305 = tpu.memref_slice %arg2[%143, %c0_i32_157] : memref<64x128xf32, #tpu.memory_space<any>> -> memref<1x128xf32, #tpu.memory_space<any>>
    %306 = tpu.memref_squeeze %305 : memref<1x128xf32, #tpu.memory_space<any>> -> memref<128xf32, #tpu.memory_space<any>>
    %c0_i32_158 = arith.constant 0 : i32
    %307 = tpu.memref_slice %arg3[%c20_i32_156, %c0_i32_158] : memref<32x128xf32, #tpu.memory_space<vmem>> -> memref<1x128xf32, #tpu.memory_space<vmem>>
    %308 = tpu.memref_squeeze %307 : memref<1x128xf32, #tpu.memory_space<vmem>> -> memref<128xf32, #tpu.memory_space<vmem>>
    tpu.wait_dma2 semaphore(%arg4 : memref<!tpu.dma_semaphore, #tpu.memory_space<semaphore_mem>>) src(%306 : memref<128xf32, #tpu.memory_space<any>>) dst(%308 : memref<128xf32, #tpu.memory_space<vmem>>)
    %c21_i32_159 = arith.constant 21 : i32
    %c0_i32_160 = arith.constant 0 : i32
    %309 = tpu.memref_slice %arg2[%150, %c0_i32_160] : memref<64x128xf32, #tpu.memory_space<any>> -> memref<1x128xf32, #tpu.memory_space<any>>
    %310 = tpu.memref_squeeze %309 : memref<1x128xf32, #tpu.memory_space<any>> -> memref<128xf32, #tpu.memory_space<any>>
    %c0_i32_161 = arith.constant 0 : i32
    %311 = tpu.memref_slice %arg3[%c21_i32_159, %c0_i32_161] : memref<32x128xf32, #tpu.memory_space<vmem>> -> memref<1x128xf32, #tpu.memory_space<vmem>>
    %312 = tpu.memref_squeeze %311 : memref<1x128xf32, #tpu.memory_space<vmem>> -> memref<128xf32, #tpu.memory_space<vmem>>
    tpu.wait_dma2 semaphore(%arg4 : memref<!tpu.dma_semaphore, #tpu.memory_space<semaphore_mem>>) src(%310 : memref<128xf32, #tpu.memory_space<any>>) dst(%312 : memref<128xf32, #tpu.memory_space<vmem>>)
    %c22_i32_162 = arith.constant 22 : i32
    %c0_i32_163 = arith.constant 0 : i32
    %313 = tpu.memref_slice %arg2[%157, %c0_i32_163] : memref<64x128xf32, #tpu.memory_space<any>> -> memref<1x128xf32, #tpu.memory_space<any>>
    %314 = tpu.memref_squeeze %313 : memref<1x128xf32, #tpu.memory_space<any>> -> memref<128xf32, #tpu.memory_space<any>>
    %c0_i32_164 = arith.constant 0 : i32
    %315 = tpu.memref_slice %arg3[%c22_i32_162, %c0_i32_164] : memref<32x128xf32, #tpu.memory_space<vmem>> -> memref<1x128xf32, #tpu.memory_space<vmem>>
    %316 = tpu.memref_squeeze %315 : memref<1x128xf32, #tpu.memory_space<vmem>> -> memref<128xf32, #tpu.memory_space<vmem>>
    tpu.wait_dma2 semaphore(%arg4 : memref<!tpu.dma_semaphore, #tpu.memory_space<semaphore_mem>>) src(%314 : memref<128xf32, #tpu.memory_space<any>>) dst(%316 : memref<128xf32, #tpu.memory_space<vmem>>)
    %c23_i32_165 = arith.constant 23 : i32
    %c0_i32_166 = arith.constant 0 : i32
    %317 = tpu.memref_slice %arg2[%164, %c0_i32_166] : memref<64x128xf32, #tpu.memory_space<any>> -> memref<1x128xf32, #tpu.memory_space<any>>
    %318 = tpu.memref_squeeze %317 : memref<1x128xf32, #tpu.memory_space<any>> -> memref<128xf32, #tpu.memory_space<any>>
    %c0_i32_167 = arith.constant 0 : i32
    %319 = tpu.memref_slice %arg3[%c23_i32_165, %c0_i32_167] : memref<32x128xf32, #tpu.memory_space<vmem>> -> memref<1x128xf32, #tpu.memory_space<vmem>>
    %320 = tpu.memref_squeeze %319 : memref<1x128xf32, #tpu.memory_space<vmem>> -> memref<128xf32, #tpu.memory_space<vmem>>
    tpu.wait_dma2 semaphore(%arg4 : memref<!tpu.dma_semaphore, #tpu.memory_space<semaphore_mem>>) src(%318 : memref<128xf32, #tpu.memory_space<any>>) dst(%320 : memref<128xf32, #tpu.memory_space<vmem>>)
    %c24_i32_168 = arith.constant 24 : i32
    %c0_i32_169 = arith.constant 0 : i32
    %321 = tpu.memref_slice %arg2[%171, %c0_i32_169] : memref<64x128xf32, #tpu.memory_space<any>> -> memref<1x128xf32, #tpu.memory_space<any>>
    %322 = tpu.memref_squeeze %321 : memref<1x128xf32, #tpu.memory_space<any>> -> memref<128xf32, #tpu.memory_space<any>>
    %c0_i32_170 = arith.constant 0 : i32
    %323 = tpu.memref_slice %arg3[%c24_i32_168, %c0_i32_170] : memref<32x128xf32, #tpu.memory_space<vmem>> -> memref<1x128xf32, #tpu.memory_space<vmem>>
    %324 = tpu.memref_squeeze %323 : memref<1x128xf32, #tpu.memory_space<vmem>> -> memref<128xf32, #tpu.memory_space<vmem>>
    tpu.wait_dma2 semaphore(%arg4 : memref<!tpu.dma_semaphore, #tpu.memory_space<semaphore_mem>>) src(%322 : memref<128xf32, #tpu.memory_space<any>>) dst(%324 : memref<128xf32, #tpu.memory_space<vmem>>)
    %c25_i32_171 = arith.constant 25 : i32
    %c0_i32_172 = arith.constant 0 : i32
    %325 = tpu.memref_slice %arg2[%178, %c0_i32_172] : memref<64x128xf32, #tpu.memory_space<any>> -> memref<1x128xf32, #tpu.memory_space<any>>
    %326 = tpu.memref_squeeze %325 : memref<1x128xf32, #tpu.memory_space<any>> -> memref<128xf32, #tpu.memory_space<any>>
    %c0_i32_173 = arith.constant 0 : i32
    %327 = tpu.memref_slice %arg3[%c25_i32_171, %c0_i32_173] : memref<32x128xf32, #tpu.memory_space<vmem>> -> memref<1x128xf32, #tpu.memory_space<vmem>>
    %328 = tpu.memref_squeeze %327 : memref<1x128xf32, #tpu.memory_space<vmem>> -> memref<128xf32, #tpu.memory_space<vmem>>
    tpu.wait_dma2 semaphore(%arg4 : memref<!tpu.dma_semaphore, #tpu.memory_space<semaphore_mem>>) src(%326 : memref<128xf32, #tpu.memory_space<any>>) dst(%328 : memref<128xf32, #tpu.memory_space<vmem>>)
    %c26_i32_174 = arith.constant 26 : i32
    %c0_i32_175 = arith.constant 0 : i32
    %329 = tpu.memref_slice %arg2[%185, %c0_i32_175] : memref<64x128xf32, #tpu.memory_space<any>> -> memref<1x128xf32, #tpu.memory_space<any>>
    %330 = tpu.memref_squeeze %329 : memref<1x128xf32, #tpu.memory_space<any>> -> memref<128xf32, #tpu.memory_space<any>>
    %c0_i32_176 = arith.constant 0 : i32
    %331 = tpu.memref_slice %arg3[%c26_i32_174, %c0_i32_176] : memref<32x128xf32, #tpu.memory_space<vmem>> -> memref<1x128xf32, #tpu.memory_space<vmem>>
    %332 = tpu.memref_squeeze %331 : memref<1x128xf32, #tpu.memory_space<vmem>> -> memref<128xf32, #tpu.memory_space<vmem>>
    tpu.wait_dma2 semaphore(%arg4 : memref<!tpu.dma_semaphore, #tpu.memory_space<semaphore_mem>>) src(%330 : memref<128xf32, #tpu.memory_space<any>>) dst(%332 : memref<128xf32, #tpu.memory_space<vmem>>)
    %c27_i32_177 = arith.constant 27 : i32
    %c0_i32_178 = arith.constant 0 : i32
    %333 = tpu.memref_slice %arg2[%192, %c0_i32_178] : memref<64x128xf32, #tpu.memory_space<any>> -> memref<1x128xf32, #tpu.memory_space<any>>
    %334 = tpu.memref_squeeze %333 : memref<1x128xf32, #tpu.memory_space<any>> -> memref<128xf32, #tpu.memory_space<any>>
    %c0_i32_179 = arith.constant 0 : i32
    %335 = tpu.memref_slice %arg3[%c27_i32_177, %c0_i32_179] : memref<32x128xf32, #tpu.memory_space<vmem>> -> memref<1x128xf32, #tpu.memory_space<vmem>>
    %336 = tpu.memref_squeeze %335 : memref<1x128xf32, #tpu.memory_space<vmem>> -> memref<128xf32, #tpu.memory_space<vmem>>
    tpu.wait_dma2 semaphore(%arg4 : memref<!tpu.dma_semaphore, #tpu.memory_space<semaphore_mem>>) src(%334 : memref<128xf32, #tpu.memory_space<any>>) dst(%336 : memref<128xf32, #tpu.memory_space<vmem>>)
    %c28_i32_180 = arith.constant 28 : i32
    %c0_i32_181 = arith.constant 0 : i32
    %337 = tpu.memref_slice %arg2[%199, %c0_i32_181] : memref<64x128xf32, #tpu.memory_space<any>> -> memref<1x128xf32, #tpu.memory_space<any>>
    %338 = tpu.memref_squeeze %337 : memref<1x128xf32, #tpu.memory_space<any>> -> memref<128xf32, #tpu.memory_space<any>>
    %c0_i32_182 = arith.constant 0 : i32
    %339 = tpu.memref_slice %arg3[%c28_i32_180, %c0_i32_182] : memref<32x128xf32, #tpu.memory_space<vmem>> -> memref<1x128xf32, #tpu.memory_space<vmem>>
    %340 = tpu.memref_squeeze %339 : memref<1x128xf32, #tpu.memory_space<vmem>> -> memref<128xf32, #tpu.memory_space<vmem>>
    tpu.wait_dma2 semaphore(%arg4 : memref<!tpu.dma_semaphore, #tpu.memory_space<semaphore_mem>>) src(%338 : memref<128xf32, #tpu.memory_space<any>>) dst(%340 : memref<128xf32, #tpu.memory_space<vmem>>)
    %c29_i32_183 = arith.constant 29 : i32
    %c0_i32_184 = arith.constant 0 : i32
    %341 = tpu.memref_slice %arg2[%206, %c0_i32_184] : memref<64x128xf32, #tpu.memory_space<any>> -> memref<1x128xf32, #tpu.memory_space<any>>
    %342 = tpu.memref_squeeze %341 : memref<1x128xf32, #tpu.memory_space<any>> -> memref<128xf32, #tpu.memory_space<any>>
    %c0_i32_185 = arith.constant 0 : i32
    %343 = tpu.memref_slice %arg3[%c29_i32_183, %c0_i32_185] : memref<32x128xf32, #tpu.memory_space<vmem>> -> memref<1x128xf32, #tpu.memory_space<vmem>>
    %344 = tpu.memref_squeeze %343 : memref<1x128xf32, #tpu.memory_space<vmem>> -> memref<128xf32, #tpu.memory_space<vmem>>
    tpu.wait_dma2 semaphore(%arg4 : memref<!tpu.dma_semaphore, #tpu.memory_space<semaphore_mem>>) src(%342 : memref<128xf32, #tpu.memory_space<any>>) dst(%344 : memref<128xf32, #tpu.memory_space<vmem>>)
    %c30_i32_186 = arith.constant 30 : i32
    %c0_i32_187 = arith.constant 0 : i32
    %345 = tpu.memref_slice %arg2[%213, %c0_i32_187] : memref<64x128xf32, #tpu.memory_space<any>> -> memref<1x128xf32, #tpu.memory_space<any>>
    %346 = tpu.memref_squeeze %345 : memref<1x128xf32, #tpu.memory_space<any>> -> memref<128xf32, #tpu.memory_space<any>>
    %c0_i32_188 = arith.constant 0 : i32
    %347 = tpu.memref_slice %arg3[%c30_i32_186, %c0_i32_188] : memref<32x128xf32, #tpu.memory_space<vmem>> -> memref<1x128xf32, #tpu.memory_space<vmem>>
    %348 = tpu.memref_squeeze %347 : memref<1x128xf32, #tpu.memory_space<vmem>> -> memref<128xf32, #tpu.memory_space<vmem>>
    tpu.wait_dma2 semaphore(%arg4 : memref<!tpu.dma_semaphore, #tpu.memory_space<semaphore_mem>>) src(%346 : memref<128xf32, #tpu.memory_space<any>>) dst(%348 : memref<128xf32, #tpu.memory_space<vmem>>)
    %c31_i32_189 = arith.constant 31 : i32
    %c0_i32_190 = arith.constant 0 : i32
    %349 = tpu.memref_slice %arg2[%220, %c0_i32_190] : memref<64x128xf32, #tpu.memory_space<any>> -> memref<1x128xf32, #tpu.memory_space<any>>
    %350 = tpu.memref_squeeze %349 : memref<1x128xf32, #tpu.memory_space<any>> -> memref<128xf32, #tpu.memory_space<any>>
    %c0_i32_191 = arith.constant 0 : i32
    %351 = tpu.memref_slice %arg3[%c31_i32_189, %c0_i32_191] : memref<32x128xf32, #tpu.memory_space<vmem>> -> memref<1x128xf32, #tpu.memory_space<vmem>>
    %352 = tpu.memref_squeeze %351 : memref<1x128xf32, #tpu.memory_space<vmem>> -> memref<128xf32, #tpu.memory_space<vmem>>
    tpu.wait_dma2 semaphore(%arg4 : memref<!tpu.dma_semaphore, #tpu.memory_space<semaphore_mem>>) src(%350 : memref<128xf32, #tpu.memory_space<any>>) dst(%352 : memref<128xf32, #tpu.memory_space<vmem>>)
    return
  }
  func.func @transform_1(%arg0: i32, %arg1: memref<32xi32, #tpu.memory_space<smem>>) -> (i32, i32) {
    %c0_i32 = arith.constant 0 : i32
    %c0_i32_0 = arith.constant 0 : i32
    return %arg0, %c0_i32 : i32, i32
  }
}

</mosaic_0001>

<llo_original>
// kernel: tpu_custom_call.1
$region0: #{tpu_custom_call.1}
  #allocation0 [shape = 'u32[]', space=smem, size = 0x4, offset = 0x4, fixed_abs, tag = 'smem constant byte address 0x4 - core index']
  #allocation1 [shape = 'u32[72,128]{1,0:T(1,128)}', space=vmem, size = 0x9000, scoped, tag = 'internal scratch']
  #allocation2 [shape = 's32[1]{0}', space=sflag, size = 0x4, scoped, tag = 'scratch operand']
  #allocation3 [shape = 's32[1]{0}', space=sflag, size = 0x4, scoped, tag = 'scoped memory for tpu_custom_call.1']
  #allocation4 [shape = 'u8[512]{0}', space=smem, size = 0x200, scoped, tag = 'prefetched SMEM operand 0']
  #allocation7 [shape = 's32[]', space=sflag, size = 0x4, offset = 0, fixed_abs, tag = 'sflag constant byte address 0x0 - dummy sync flag']
  #allocation8 [shape = 's32[]', space=sflag, size = 0x4, offset = 0, fixed_abs, tag = 'sflag constant byte address 0x0 - dummy sync flag']
  #allocation9 [shape = 'u32[]', space=smem, size = 0x4, offset = 0x44, fixed_abs, tag = 'smem constant byte address 0x44 - assertion arg 0']
  #allocation10 [shape = 'u32[]', space=smem, size = 0x4, offset = 0x48, fixed_abs, tag = 'smem constant byte address 0x48 - assertion arg 1']
  #allocation11 [shape = 's32[]', space=sflag, size = 0x4, offset = 0, fixed_abs, tag = 'sflag constant byte address 0x0 - dummy sync flag']
  #allocation12 [shape = 's32[]', space=sflag, size = 0x4, offset = 0, fixed_abs, tag = 'sflag constant byte address 0x0 - dummy sync flag']
  #allocation13 [shape = 's32[]', space=sflag, size = 0x4, offset = 0, fixed_abs, tag = 'sflag constant byte address 0x0 - dummy sync flag']
  #allocation14 [shape = 's32[]', space=sflag, size = 0x4, offset = 0, fixed_abs, tag = 'sflag constant byte address 0x0 - dummy sync flag']
  #allocation15 [shape = 's32[]', space=sflag, size = 0x4, offset = 0, fixed_abs, tag = 'sflag constant byte address 0x0 - dummy sync flag']
  #allocation16 [shape = 's32[]', space=sflag, size = 0x4, offset = 0, fixed_abs, tag = 'sflag constant byte address 0x0 - dummy sync flag']
  #allocation17 [shape = 's32[]', space=sflag, size = 0x4, offset = 0, fixed_abs, tag = 'sflag constant byte address 0x0 - dummy sync flag']
  #allocation18 [shape = 's32[]', space=sflag, size = 0x4, offset = 0, fixed_abs, tag = 'sflag constant byte address 0x0 - dummy sync flag']
  #allocation19 [shape = 's32[]', space=sflag, size = 0x4, offset = 0, fixed_abs, tag = 'sflag constant byte address 0x0 - dummy sync flag']
  #allocation20 [shape = 's32[]', space=sflag, size = 0x4, offset = 0, fixed_abs, tag = 'sflag constant byte address 0x0 - dummy sync flag']
  #allocation21 [shape = 's32[]', space=sflag, size = 0x4, offset = 0, fixed_abs, tag = 'sflag constant byte address 0x0 - dummy sync flag']
  #allocation22 [shape = 's32[]', space=sflag, size = 0x4, offset = 0, fixed_abs, tag = 'sflag constant byte address 0x0 - dummy sync flag']
  #allocation23 [shape = 's32[]', space=sflag, size = 0x4, offset = 0, fixed_abs, tag = 'sflag constant byte address 0x0 - dummy sync flag']
  #allocation24 [shape = 's32[]', space=sflag, size = 0x4, offset = 0, fixed_abs, tag = 'sflag constant byte address 0x0 - dummy sync flag']
  #allocation25 [shape = 's32[]', space=sflag, size = 0x4, offset = 0, fixed_abs, tag = 'sflag constant byte address 0x0 - dummy sync flag']
  #allocation26 [shape = 's32[]', space=sflag, size = 0x4, offset = 0, fixed_abs, tag = 'sflag constant byte address 0x0 - dummy sync flag']
  #allocation27 [shape = 's32[]', space=sflag, size = 0x4, offset = 0, fixed_abs, tag = 'sflag constant byte address 0x0 - dummy sync flag']
  #allocation28 [shape = 's32[]', space=sflag, size = 0x4, offset = 0, fixed_abs, tag = 'sflag constant byte address 0x0 - dummy sync flag']
  #allocation29 [shape = 's32[]', space=sflag, size = 0x4, offset = 0, fixed_abs, tag = 'sflag constant byte address 0x0 - dummy sync flag']
  #allocation30 [shape = 's32[]', space=sflag, size = 0x4, offset = 0, fixed_abs, tag = 'sflag constant byte address 0x0 - dummy sync flag']
  #allocation31 [shape = 's32[]', space=sflag, size = 0x4, offset = 0, fixed_abs, tag = 'sflag constant byte address 0x0 - dummy sync flag']
  #allocation32 [shape = 's32[]', space=sflag, size = 0x4, offset = 0, fixed_abs, tag = 'sflag constant byte address 0x0 - dummy sync flag']
  #allocation33 [shape = 's32[]', space=sflag, size = 0x4, offset = 0, fixed_abs, tag = 'sflag constant byte address 0x0 - dummy sync flag']
  #allocation34 [shape = 's32[]', space=sflag, size = 0x4, offset = 0, fixed_abs, tag = 'sflag constant byte address 0x0 - dummy sync flag']
  #allocation35 [shape = 's32[]', space=sflag, size = 0x4, offset = 0, fixed_abs, tag = 'sflag constant byte address 0x0 - dummy sync flag']
  #allocation36 [shape = 's32[]', space=sflag, size = 0x4, offset = 0, fixed_abs, tag = 'sflag constant byte address 0x0 - dummy sync flag']
  #allocation37 [shape = 's32[]', space=sflag, size = 0x4, offset = 0, fixed_abs, tag = 'sflag constant byte address 0x0 - dummy sync flag']
  #allocation38 [shape = 's32[]', space=sflag, size = 0x4, offset = 0, fixed_abs, tag = 'sflag constant byte address 0x0 - dummy sync flag']
  #allocation39 [shape = 's32[]', space=sflag, size = 0x4, offset = 0, fixed_abs, tag = 'sflag constant byte address 0x0 - dummy sync flag']
  #allocation40 [shape = 's32[]', space=sflag, size = 0x4, offset = 0, fixed_abs, tag = 'sflag constant byte address 0x0 - dummy sync flag']
  #allocation41 [shape = 's32[]', space=sflag, size = 0x4, offset = 0, fixed_abs, tag = 'sflag constant byte address 0x0 - dummy sync flag']
  #allocation42 [shape = 's32[]', space=sflag, size = 0x4, offset = 0, fixed_abs, tag = 'sflag constant byte address 0x0 - dummy sync flag']
  #allocation43 [shape = 's32[]', space=sflag, size = 0x4, offset = 0, fixed_abs, tag = 'sflag constant byte address 0x0 - dummy sync flag']
  #allocation44 [shape = 's32[]', space=sflag, size = 0x4, offset = 0, fixed_abs, tag = 'sflag constant byte address 0x0 - dummy sync flag']
  #allocation45 [shape = 's32[]', space=sflag, size = 0x4, offset = 0, fixed_abs, tag = 'sflag constant byte address 0x0 - dummy sync flag']
  #allocation46 [shape = 's32[]', space=sflag, size = 0x4, offset = 0, fixed_abs, tag = 'sflag constant byte address 0x0 - dummy sync flag']
  #allocation47 [shape = 's32[]', space=sflag, size = 0x4, offset = 0, fixed_abs, tag = 'sflag constant byte address 0x0 - dummy sync flag']
  #allocation48 [shape = 's32[]', space=sflag, size = 0x4, offset = 0, fixed_abs, tag = 'sflag constant byte address 0x0 - dummy sync flag']
  #allocation49 [shape = 's32[]', space=sflag, size = 0x4, offset = 0, fixed_abs, tag = 'sflag constant byte address 0x0 - dummy sync flag']
  #allocation50 [shape = 's32[]', space=sflag, size = 0x4, offset = 0, fixed_abs, tag = 'sflag constant byte address 0x0 - dummy sync flag']
  #allocation51 [shape = 's32[]', space=sflag, size = 0x4, offset = 0, fixed_abs, tag = 'sflag constant byte address 0x0 - dummy sync flag']
  #allocation52 [shape = 's32[]', space=sflag, size = 0x4, offset = 0, fixed_abs, tag = 'sflag constant byte address 0x0 - dummy sync flag']
  #allocation53 [shape = 's32[]', space=sflag, size = 0x4, offset = 0, fixed_abs, tag = 'sflag constant byte address 0x0 - dummy sync flag']
  #allocation54 [shape = 's32[]', space=sflag, size = 0x4, offset = 0, fixed_abs, tag = 'sflag constant byte address 0x0 - dummy sync flag']
  #allocation55 [shape = 's32[]', space=sflag, size = 0x4, offset = 0, fixed_abs, tag = 'sflag constant byte address 0x0 - dummy sync flag']
  #allocation56 [shape = 's32[]', space=sflag, size = 0x4, offset = 0, fixed_abs, tag = 'sflag constant byte address 0x0 - dummy sync flag']
  #allocation57 [shape = 's32[]', space=sflag, size = 0x4, offset = 0, fixed_abs, tag = 'sflag constant byte address 0x0 - dummy sync flag']
  #allocation58 [shape = 's32[]', space=sflag, size = 0x4, offset = 0, fixed_abs, tag = 'sflag constant byte address 0x0 - dummy sync flag']
  #allocation59 [shape = 's32[]', space=sflag, size = 0x4, offset = 0, fixed_abs, tag = 'sflag constant byte address 0x0 - dummy sync flag']
  #allocation60 [shape = 's32[]', space=sflag, size = 0x4, offset = 0, fixed_abs, tag = 'sflag constant byte address 0x0 - dummy sync flag']
  #allocation61 [shape = 's32[]', space=sflag, size = 0x4, offset = 0, fixed_abs, tag = 'sflag constant byte address 0x0 - dummy sync flag']
  #allocation62 [shape = 's32[]', space=sflag, size = 0x4, offset = 0, fixed_abs, tag = 'sflag constant byte address 0x0 - dummy sync flag']
  #allocation63 [shape = 's32[]', space=sflag, size = 0x4, offset = 0, fixed_abs, tag = 'sflag constant byte address 0x0 - dummy sync flag']
  #allocation64 [shape = 's32[]', space=sflag, size = 0x4, offset = 0, fixed_abs, tag = 'sflag constant byte address 0x0 - dummy sync flag']
  #allocation65 [shape = 's32[]', space=sflag, size = 0x4, offset = 0, fixed_abs, tag = 'sflag constant byte address 0x0 - dummy sync flag']
  #allocation66 [shape = 's32[]', space=sflag, size = 0x4, offset = 0, fixed_abs, tag = 'sflag constant byte address 0x0 - dummy sync flag']
  #allocation67 [shape = 's32[]', space=sflag, size = 0x4, offset = 0, fixed_abs, tag = 'sflag constant byte address 0x0 - dummy sync flag']
  #allocation68 [shape = 's32[]', space=sflag, size = 0x4, offset = 0, fixed_abs, tag = 'sflag constant byte address 0x0 - dummy sync flag']
  #allocation69 [shape = 's32[]', space=sflag, size = 0x4, offset = 0, fixed_abs, tag = 'sflag constant byte address 0x0 - dummy sync flag']
  #allocation70 [shape = 's32[]', space=sflag, size = 0x4, offset = 0, fixed_abs, tag = 'sflag constant byte address 0x0 - dummy sync flag']
  #allocation71 [shape = 's32[]', space=sflag, size = 0x4, offset = 0, fixed_abs, tag = 'sflag constant byte address 0x0 - dummy sync flag']
  #allocation72 [shape = 's32[]', space=sflag, size = 0x4, offset = 0, fixed_abs, tag = 'sflag constant byte address 0x0 - dummy sync flag']
  %s0 = inlined_call_operand.hbm [shape: s32[32], index: 0, kind: input, shape index: {}]
  %s1 = inlined_call_operand.hbm [shape: f32[64,128], index: 1, kind: input, shape index: {}]
  %s2 = inlined_call_operand.hbm [shape: f32[32,128], index: 2, kind: output, shape index: {}]
  %s3 = sld [smem:[#allocation0]]
  $region138: #{tpu_custom_call.1} parent=0
    _
  %s5 = ssub.s32 1, %s3
  %s6 = scalar_select 0, %s5, %s3
  %s8 = sshll.u32 %s0, 4
  %s9 = int_to_ptr.hbm [resolvable:$true] %s8
  %11 = dma.hbm_to_smem %s9, 16, [#allocation4], [#allocation3]
  %13 = dma.done [#allocation3], 16
  %14 = sfence
  $region1: #{tpu_custom_call.1} parent=0
    #allocation5 [shape = 'u8[16384]{0}', space=vmem, size = 0x4000, scoped, tag = 'output window, operand 0, single buffered']
    #allocation6 [shape = 's32[1]{0}', space=sflag, size = 0x4, scoped, tag = 'scoped memory for tpu_custom_call.1']
    %15 = vsyncpa [#allocation6], 0
    %s16 = smul.u32 0, 32
    %s17 = sld [smem:[#allocation4 + %s16]]
    %s18 = scalar_lea.hbm %s1, %s17
    // Predicated region
    $region2: #{tpu_custom_call.1} parent=1 // pred_check
      _
    $region3: #{tpu_custom_call.1} parent=1 // pred_check_branch
      %20 = sbr.rel target = $region5
    $region4: #{tpu_custom_call.1} parent=1 // pred_region
      %21 = sst [smem:[#allocation9]] [#allocation8]
      %22 = sst [smem:[#allocation10]] [#allocation7]
    $region5: #{tpu_custom_call.1} parent=1 // pred_fallthru
      _
    %24 = shalt.err (0)
    %s26 = sshll.u32 %s18, 4
    %s27 = int_to_ptr.hbm [resolvable:$true] %s26
    %s28 = sshll.u32 [#allocation5], 4
    %s29 = int_to_ptr.vmem [resolvable:$true] %s28
    %31 = dma.hbm_to_vmem [thread:$0]  %s27, 16, %s29, [#allocation2]
    %s32 = sadd.s32 %s16, 1
    %s33 = sld [smem:[#allocation4 + %s32]]
    %s34 = scalar_lea.hbm %s1, %s33
    %s35 = scalar_lea.vmem [#allocation5], 1
    // Predicated region
    $region6: #{tpu_custom_call.1} parent=1 // pred_check
      _
    $region7: #{tpu_custom_call.1} parent=1 // pred_check_branch
      %37 = sbr.rel target = $region9
    $region8: #{tpu_custom_call.1} parent=1 // pred_region
      %38 = sst [smem:[#allocation9]] [#allocation12]
      %39 = sst [smem:[#allocation10]] [#allocation11]
    $region9: #{tpu_custom_call.1} parent=1 // pred_fallthru
      _
    %41 = shalt.err (0)
    %s43 = sshll.u32 %s34, 4
    %s44 = int_to_ptr.hbm [resolvable:$true] %s43
    %s45 = sshll.u32 %s35, 4
    %s46 = int_to_ptr.vmem [resolvable:$true] %s45
    %48 = dma.hbm_to_vmem [thread:$0]  %s44, 16, %s46, [#allocation2]
    %s49 = sadd.s32 %s16, 2
    %s50 = sld [smem:[#allocation4 + %s49]]
    %s51 = scalar_lea.hbm %s1, %s50
    %s52 = scalar_lea.vmem [#allocation5], 2
    // Predicated region
    $region10: #{tpu_custom_call.1} parent=1 // pred_check
      _
    $region11: #{tpu_custom_call.1} parent=1 // pred_check_branch
      %54 = sbr.rel target = $region13
    $region12: #{tpu_custom_call.1} parent=1 // pred_region
      %55 = sst [smem:[#allocation9]] [#allocation14]
      %56 = sst [smem:[#allocation10]] [#allocation13]
    $region13: #{tpu_custom_call.1} parent=1 // pred_fallthru
      _
    %58 = shalt.err (0)
    %s60 = sshll.u32 %s51, 4
    %s61 = int_to_ptr.hbm [resolvable:$true] %s60
    %s62 = sshll.u32 %s52, 4
    %s63 = int_to_ptr.vmem [resolvable:$true] %s62
    %65 = dma.hbm_to_vmem [thread:$0]  %s61, 16, %s63, [#allocation2]
    %s66 = sadd.s32 %s16, 3
    %s67 = sld [smem:[#allocation4 + %s66]]
    %s68 = scalar_lea.hbm %s1, %s67
    %s69 = scalar_lea.vmem [#allocation5], 3
    // Predicated region
    $region14: #{tpu_custom_call.1} parent=1 // pred_check
      _
    $region15: #{tpu_custom_call.1} parent=1 // pred_check_branch
      %71 = sbr.rel target = $region17
    $region16: #{tpu_custom_call.1} parent=1 // pred_region
      %72 = sst [smem:[#allocation9]] [#allocation16]
      %73 = sst [smem:[#allocation10]] [#allocation15]
    $region17: #{tpu_custom_call.1} parent=1 // pred_fallthru
      _
    %75 = shalt.err (0)
    %s77 = sshll.u32 %s68, 4
    %s78 = int_to_ptr.hbm [resolvable:$true] %s77
    %s79 = sshll.u32 %s69, 4
    %s80 = int_to_ptr.vmem [resolvable:$true] %s79
    %82 = dma.hbm_to_vmem [thread:$0]  %s78, 16, %s80, [#allocation2]
    %s83 = sadd.s32 %s16, 4
    %s84 = sld [smem:[#allocation4 + %s83]]
    %s85 = scalar_lea.hbm %s1, %s84
    %s86 = scalar_lea.vmem [#allocation5], 4
    // Predicated region
    $region18: #{tpu_custom_call.1} parent=1 // pred_check
      _
    $region19: #{tpu_custom_call.1} parent=1 // pred_check_branch
      %88 = sbr.rel target = $region21
    $region20: #{tpu_custom_call.1} parent=1 // pred_region
      %89 = sst [smem:[#allocation9]] [#allocation18]
      %90 = sst [smem:[#allocation10]] [#allocation17]
    $region21: #{tpu_custom_call.1} parent=1 // pred_fallthru
      _
    %92 = shalt.err (0)
    %s94 = sshll.u32 %s85, 4
    %s95 = int_to_ptr.hbm [resolvable:$true] %s94
    %s96 = sshll.u32 %s86, 4
    %s97 = int_to_ptr.vmem [resolvable:$true] %s96
    %99 = dma.hbm_to_vmem [thread:$0]  %s95, 16, %s97, [#allocation2]
    %s100 = sadd.s32 %s16, 5
    %s101 = sld [smem:[#allocation4 + %s100]]
    %s102 = scalar_lea.hbm %s1, %s101
    %s103 = scalar_lea.vmem [#allocation5], 5
    // Predicated region
    $region22: #{tpu_custom_call.1} parent=1 // pred_check
      _
    $region23: #{tpu_custom_call.1} parent=1 // pred_check_branch
      %105 = sbr.rel target = $region25
    $region24: #{tpu_custom_call.1} parent=1 // pred_region
      %106 = sst [smem:[#allocation9]] [#allocation20]
      %107 = sst [smem:[#allocation10]] [#allocation19]
    $region25: #{tpu_custom_call.1} parent=1 // pred_fallthru
      _
    %109 = shalt.err (0)
    %s111 = sshll.u32 %s102, 4
    %s112 = int_to_ptr.hbm [resolvable:$true] %s111
    %s113 = sshll.u32 %s103, 4
    %s114 = int_to_ptr.vmem [resolvable:$true] %s113
    %116 = dma.hbm_to_vmem [thread:$0]  %s112, 16, %s114, [#allocation2]
    %s117 = sadd.s32 %s16, 6
    %s118 = sld [smem:[#allocation4 + %s117]]
    %s119 = scalar_lea.hbm %s1, %s118
    %s120 = scalar_lea.vmem [#allocation5], 6
    // Predicated region
    $region26: #{tpu_custom_call.1} parent=1 // pred_check
      _
    $region27: #{tpu_custom_call.1} parent=1 // pred_check_branch
      %122 = sbr.rel target = $region29
    $region28: #{tpu_custom_call.1} parent=1 // pred_region
      %123 = sst [smem:[#allocation9]] [#allocation22]
      %124 = sst [smem:[#allocation10]] [#allocation21]
    $region29: #{tpu_custom_call.1} parent=1 // pred_fallthru
      _
    %126 = shalt.err (0)
    %s128 = sshll.u32 %s119, 4
    %s129 = int_to_ptr.hbm [resolvable:$true] %s128
    %s130 = sshll.u32 %s120, 4
    %s131 = int_to_ptr.vmem [resolvable:$true] %s130
    %133 = dma.hbm_to_vmem [thread:$0]  %s129, 16, %s131, [#allocation2]
    %s134 = sadd.s32 %s16, 7
    %s135 = sld [smem:[#allocation4 + %s134]]
    %s136 = scalar_lea.hbm %s1, %s135
    %s137 = scalar_lea.vmem [#allocation5], 7
    // Predicated region
    $region30: #{tpu_custom_call.1} parent=1 // pred_check
      _
    $region31: #{tpu_custom_call.1} parent=1 // pred_check_branch
      %139 = sbr.rel target = $region33
    $region32: #{tpu_custom_call.1} parent=1 // pred_region
      %140 = sst [smem:[#allocation9]] [#allocation24]
      %141 = sst [smem:[#allocation10]] [#allocation23]
    $region33: #{tpu_custom_call.1} parent=1 // pred_fallthru
      _
    %143 = shalt.err (0)
    %s145 = sshll.u32 %s136, 4
    %s146 = int_to_ptr.hbm [resolvable:$true] %s145
    %s147 = sshll.u32 %s137, 4
    %s148 = int_to_ptr.vmem [resolvable:$true] %s147
    %150 = dma.hbm_to_vmem [thread:$0]  %s146, 16, %s148, [#allocation2]
    %s151 = sadd.s32 %s16, 8
    %s152 = sld [smem:[#allocation4 + %s151]]
    %s153 = scalar_lea.hbm %s1, %s152
    %s154 = scalar_lea.vmem [#allocation5], 8
    // Predicated region
    $region34: #{tpu_custom_call.1} parent=1 // pred_check
      _
    $region35: #{tpu_custom_call.1} parent=1 // pred_check_branch
      %156 = sbr.rel target = $region37
    $region36: #{tpu_custom_call.1} parent=1 // pred_region
      %157 = sst [smem:[#allocation9]] [#allocation26]
      %158 = sst [smem:[#allocation10]] [#allocation25]
    $region37: #{tpu_custom_call.1} parent=1 // pred_fallthru
      _
    %160 = shalt.err (0)
    %s162 = sshll.u32 %s153, 4
    %s163 = int_to_ptr.hbm [resolvable:$true] %s162
    %s164 = sshll.u32 %s154, 4
    %s165 = int_to_ptr.vmem [resolvable:$true] %s164
    %167 = dma.hbm_to_vmem [thread:$0]  %s163, 16, %s165, [#allocation2]
    %s168 = sadd.s32 %s16, 9
    %s169 = sld [smem:[#allocation4 + %s168]]
    %s170 = scalar_lea.hbm %s1, %s169
    %s171 = scalar_lea.vmem [#allocation5], 9
    // Predicated region
    $region38: #{tpu_custom_call.1} parent=1 // pred_check
      _
    $region39: #{tpu_custom_call.1} parent=1 // pred_check_branch
      %173 = sbr.rel target = $region41
    $region40: #{tpu_custom_call.1} parent=1 // pred_region
      %174 = sst [smem:[#allocation9]] [#allocation28]
      %175 = sst [smem:[#allocation10]] [#allocation27]
    $region41: #{tpu_custom_call.1} parent=1 // pred_fallthru
      _
    %177 = shalt.err (0)
    %s179 = sshll.u32 %s170, 4
    %s180 = int_to_ptr.hbm [resolvable:$true] %s179
    %s181 = sshll.u32 %s171, 4
    %s182 = int_to_ptr.vmem [resolvable:$true] %s181
    %184 = dma.hbm_to_vmem [thread:$0]  %s180, 16, %s182, [#allocation2]
    %s185 = sadd.s32 %s16, 10
    %s186 = sld [smem:[#allocation4 + %s185]]
    %s187 = scalar_lea.hbm %s1, %s186
    %s188 = scalar_lea.vmem [#allocation5], 10
    // Predicated region
    $region42: #{tpu_custom_call.1} parent=1 // pred_check
      _
    $region43: #{tpu_custom_call.1} parent=1 // pred_check_branch
      %190 = sbr.rel target = $region45
    $region44: #{tpu_custom_call.1} parent=1 // pred_region
      %191 = sst [smem:[#allocation9]] [#allocation30]
      %192 = sst [smem:[#allocation10]] [#allocation29]
    $region45: #{tpu_custom_call.1} parent=1 // pred_fallthru
      _
    %194 = shalt.err (0)
    %s196 = sshll.u32 %s187, 4
    %s197 = int_to_ptr.hbm [resolvable:$true] %s196
    %s198 = sshll.u32 %s188, 4
    %s199 = int_to_ptr.vmem [resolvable:$true] %s198
    %201 = dma.hbm_to_vmem [thread:$0]  %s197, 16, %s199, [#allocation2]
    %s202 = sadd.s32 %s16, 11
    %s203 = sld [smem:[#allocation4 + %s202]]
    %s204 = scalar_lea.hbm %s1, %s203
    %s205 = scalar_lea.vmem [#allocation5], 11
    // Predicated region
    $region46: #{tpu_custom_call.1} parent=1 // pred_check
      _
    $region47: #{tpu_custom_call.1} parent=1 // pred_check_branch
      %207 = sbr.rel target = $region49
    $region48: #{tpu_custom_call.1} parent=1 // pred_region
      %208 = sst [smem:[#allocation9]] [#allocation32]
      %209 = sst [smem:[#allocation10]] [#allocation31]
    $region49: #{tpu_custom_call.1} parent=1 // pred_fallthru
      _
    %211 = shalt.err (0)
    %s213 = sshll.u32 %s204, 4
    %s214 = int_to_ptr.hbm [resolvable:$true] %s213
    %s215 = sshll.u32 %s205, 4
    %s216 = int_to_ptr.vmem [resolvable:$true] %s215
    %218 = dma.hbm_to_vmem [thread:$0]  %s214, 16, %s216, [#allocation2]
    %s219 = sadd.s32 %s16, 12
    %s220 = sld [smem:[#allocation4 + %s219]]
    %s221 = scalar_lea.hbm %s1, %s220
    %s222 = scalar_lea.vmem [#allocation5], 12
    // Predicated region
    $region50: #{tpu_custom_call.1} parent=1 // pred_check
      _
    $region51: #{tpu_custom_call.1} parent=1 // pred_check_branch
      %224 = sbr.rel target = $region53
    $region52: #{tpu_custom_call.1} parent=1 // pred_region
      %225 = sst [smem:[#allocation9]] [#allocation34]
      %226 = sst [smem:[#allocation10]] [#allocation33]
    $region53: #{tpu_custom_call.1} parent=1 // pred_fallthru
      _
    %228 = shalt.err (0)
    %s230 = sshll.u32 %s221, 4
    %s231 = int_to_ptr.hbm [resolvable:$true] %s230
    %s232 = sshll.u32 %s222, 4
    %s233 = int_to_ptr.vmem [resolvable:$true] %s232
    %235 = dma.hbm_to_vmem [thread:$0]  %s231, 16, %s233, [#allocation2]
    %s236 = sadd.s32 %s16, 13
    %s237 = sld [smem:[#allocation4 + %s236]]
    %s238 = scalar_lea.hbm %s1, %s237
    %s239 = scalar_lea.vmem [#allocation5], 13
    // Predicated region
    $region54: #{tpu_custom_call.1} parent=1 // pred_check
      _
    $region55: #{tpu_custom_call.1} parent=1 // pred_check_branch
      %241 = sbr.rel target = $region57
    $region56: #{tpu_custom_call.1} parent=1 // pred_region
      %242 = sst [smem:[#allocation9]] [#allocation36]
      %243 = sst [smem:[#allocation10]] [#allocation35]
    $region57: #{tpu_custom_call.1} parent=1 // pred_fallthru
      _
    %245 = shalt.err (0)
    %s247 = sshll.u32 %s238, 4
    %s248 = int_to_ptr.hbm [resolvable:$true] %s247
    %s249 = sshll.u32 %s239, 4
    %s250 = int_to_ptr.vmem [resolvable:$true] %s249
    %252 = dma.hbm_to_vmem [thread:$0]  %s248, 16, %s250, [#allocation2]
    %s253 = sadd.s32 %s16, 14
    %s254 = sld [smem:[#allocation4 + %s253]]
    %s255 = scalar_lea.hbm %s1, %s254
    %s256 = scalar_lea.vmem [#allocation5], 14
    // Predicated region
    $region58: #{tpu_custom_call.1} parent=1 // pred_check
      _
    $region59: #{tpu_custom_call.1} parent=1 // pred_check_branch
      %258 = sbr.rel target = $region61
    $region60: #{tpu_custom_call.1} parent=1 // pred_region
      %259 = sst [smem:[#allocation9]] [#allocation38]
      %260 = sst [smem:[#allocation10]] [#allocation37]
    $region61: #{tpu_custom_call.1} parent=1 // pred_fallthru
      _
    %262 = shalt.err (0)
    %s264 = sshll.u32 %s255, 4
    %s265 = int_to_ptr.hbm [resolvable:$true] %s264
    %s266 = sshll.u32 %s256, 4
    %s267 = int_to_ptr.vmem [resolvable:$true] %s266
    %269 = dma.hbm_to_vmem [thread:$0]  %s265, 16, %s267, [#allocation2]
    %s270 = sadd.s32 %s16, 15
    %s271 = sld [smem:[#allocation4 + %s270]]
    %s272 = scalar_lea.hbm %s1, %s271
    %s273 = scalar_lea.vmem [#allocation5], 15
    // Predicated region
    $region62: #{tpu_custom_call.1} parent=1 // pred_check
      _
    $region63: #{tpu_custom_call.1} parent=1 // pred_check_branch
      %275 = sbr.rel target = $region65
    $region64: #{tpu_custom_call.1} parent=1 // pred_region
      %276 = sst [smem:[#allocation9]] [#allocation40]
      %277 = sst [smem:[#allocation10]] [#allocation39]
    $region65: #{tpu_custom_call.1} parent=1 // pred_fallthru
      _
    %279 = shalt.err (0)
    %s281 = sshll.u32 %s272, 4
    %s282 = int_to_ptr.hbm [resolvable:$true] %s281
    %s283 = sshll.u32 %s273, 4
    %s284 = int_to_ptr.vmem [resolvable:$true] %s283
    %286 = dma.hbm_to_vmem [thread:$0]  %s282, 16, %s284, [#allocation2]
    %s287 = sadd.s32 %s16, 16
    %s288 = sld [smem:[#allocation4 + %s287]]
    %s289 = scalar_lea.hbm %s1, %s288
    %s290 = scalar_lea.vmem [#allocation5], 16
    // Predicated region
    $region66: #{tpu_custom_call.1} parent=1 // pred_check
      _
    $region67: #{tpu_custom_call.1} parent=1 // pred_check_branch
      %292 = sbr.rel target = $region69
    $region68: #{tpu_custom_call.1} parent=1 // pred_region
      %293 = sst [smem:[#allocation9]] [#allocation42]
      %294 = sst [smem:[#allocation10]] [#allocation41]
    $region69: #{tpu_custom_call.1} parent=1 // pred_fallthru
      _
    %296 = shalt.err (0)
    %s298 = sshll.u32 %s289, 4
    %s299 = int_to_ptr.hbm [resolvable:$true] %s298
    %s300 = sshll.u32 %s290, 4
    %s301 = int_to_ptr.vmem [resolvable:$true] %s300
    %303 = dma.hbm_to_vmem [thread:$0]  %s299, 16, %s301, [#allocation2]
    %s304 = sadd.s32 %s16, 17
    %s305 = sld [smem:[#allocation4 + %s304]]
    %s306 = scalar_lea.hbm %s1, %s305
    %s307 = scalar_lea.vmem [#allocation5], 17
    // Predicated region
    $region70: #{tpu_custom_call.1} parent=1 // pred_check
      _
    $region71: #{tpu_custom_call.1} parent=1 // pred_check_branch
      %309 = sbr.rel target = $region73
    $region72: #{tpu_custom_call.1} parent=1 // pred_region
      %310 = sst [smem:[#allocation9]] [#allocation44]
      %311 = sst [smem:[#allocation10]] [#allocation43]
    $region73: #{tpu_custom_call.1} parent=1 // pred_fallthru
      _
    %313 = shalt.err (0)
    %s315 = sshll.u32 %s306, 4
    %s316 = int_to_ptr.hbm [resolvable:$true] %s315
    %s317 = sshll.u32 %s307, 4
    %s318 = int_to_ptr.vmem [resolvable:$true] %s317
    %320 = dma.hbm_to_vmem [thread:$0]  %s316, 16, %s318, [#allocation2]
    %s321 = sadd.s32 %s16, 18
    %s322 = sld [smem:[#allocation4 + %s321]]
    %s323 = scalar_lea.hbm %s1, %s322
    %s324 = scalar_lea.vmem [#allocation5], 18
    // Predicated region
    $region74: #{tpu_custom_call.1} parent=1 // pred_check
      _
    $region75: #{tpu_custom_call.1} parent=1 // pred_check_branch
      %326 = sbr.rel target = $region77
    $region76: #{tpu_custom_call.1} parent=1 // pred_region
      %327 = sst [smem:[#allocation9]] [#allocation46]
      %328 = sst [smem:[#allocation10]] [#allocation45]
    $region77: #{tpu_custom_call.1} parent=1 // pred_fallthru
      _
    %330 = shalt.err (0)
    %s332 = sshll.u32 %s323, 4
    %s333 = int_to_ptr.hbm [resolvable:$true] %s332
    %s334 = sshll.u32 %s324, 4
    %s335 = int_to_ptr.vmem [resolvable:$true] %s334
    %337 = dma.hbm_to_vmem [thread:$0]  %s333, 16, %s335, [#allocation2]
    %s338 = sadd.s32 %s16, 19
    %s339 = sld [smem:[#allocation4 + %s338]]
    %s340 = scalar_lea.hbm %s1, %s339
    %s341 = scalar_lea.vmem [#allocation5], 19
    // Predicated region
    $region78: #{tpu_custom_call.1} parent=1 // pred_check
      _
    $region79: #{tpu_custom_call.1} parent=1 // pred_check_branch
      %343 = sbr.rel target = $region81
    $region80: #{tpu_custom_call.1} parent=1 // pred_region
      %344 = sst [smem:[#allocation9]] [#allocation48]
      %345 = sst [smem:[#allocation10]] [#allocation47]
    $region81: #{tpu_custom_call.1} parent=1 // pred_fallthru
      _
    %347 = shalt.err (0)
    %s349 = sshll.u32 %s340, 4
    %s350 = int_to_ptr.hbm [resolvable:$true] %s349
    %s351 = sshll.u32 %s341, 4
    %s352 = int_to_ptr.vmem [resolvable:$true] %s351
    %354 = dma.hbm_to_vmem [thread:$0]  %s350, 16, %s352, [#allocation2]
    %s355 = sadd.s32 %s16, 20
    %s356 = sld [smem:[#allocation4 + %s355]]
    %s357 = scalar_lea.hbm %s1, %s356
    %s358 = scalar_lea.vmem [#allocation5], 20
    // Predicated region
    $region82: #{tpu_custom_call.1} parent=1 // pred_check
      _
    $region83: #{tpu_custom_call.1} parent=1 // pred_check_branch
      %360 = sbr.rel target = $region85
    $region84: #{tpu_custom_call.1} parent=1 // pred_region
      %361 = sst [smem:[#allocation9]] [#allocation50]
      %362 = sst [smem:[#allocation10]] [#allocation49]
    $region85: #{tpu_custom_call.1} parent=1 // pred_fallthru
      _
    %364 = shalt.err (0)
    %s366 = sshll.u32 %s357, 4
    %s367 = int_to_ptr.hbm [resolvable:$true] %s366
    %s368 = sshll.u32 %s358, 4
    %s369 = int_to_ptr.vmem [resolvable:$true] %s368
    %371 = dma.hbm_to_vmem [thread:$0]  %s367, 16, %s369, [#allocation2]
    %s372 = sadd.s32 %s16, 21
    %s373 = sld [smem:[#allocation4 + %s372]]
    %s374 = scalar_lea.hbm %s1, %s373
    %s375 = scalar_lea.vmem [#allocation5], 21
    // Predicated region
    $region86: #{tpu_custom_call.1} parent=1 // pred_check
      _
    $region87: #{tpu_custom_call.1} parent=1 // pred_check_branch
      %377 = sbr.rel target = $region89
    $region88: #{tpu_custom_call.1} parent=1 // pred_region
      %378 = sst [smem:[#allocation9]] [#allocation52]
      %379 = sst [smem:[#allocation10]] [#allocation51]
    $region89: #{tpu_custom_call.1} parent=1 // pred_fallthru
      _
    %381 = shalt.err (0)
    %s383 = sshll.u32 %s374, 4
    %s384 = int_to_ptr.hbm [resolvable:$true] %s383
    %s385 = sshll.u32 %s375, 4
    %s386 = int_to_ptr.vmem [resolvable:$true] %s385
    %388 = dma.hbm_to_vmem [thread:$0]  %s384, 16, %s386, [#allocation2]
    %s389 = sadd.s32 %s16, 22
    %s390 = sld [smem:[#allocation4 + %s389]]
    %s391 = scalar_lea.hbm %s1, %s390
    %s392 = scalar_lea.vmem [#allocation5], 22
    // Predicated region
    $region90: #{tpu_custom_call.1} parent=1 // pred_check
      _
    $region91: #{tpu_custom_call.1} parent=1 // pred_check_branch
      %394 = sbr.rel target = $region93
    $region92: #{tpu_custom_call.1} parent=1 // pred_region
      %395 = sst [smem:[#allocation9]] [#allocation54]
      %396 = sst [smem:[#allocation10]] [#allocation53]
    $region93: #{tpu_custom_call.1} parent=1 // pred_fallthru
      _
    %398 = shalt.err (0)
    %s400 = sshll.u32 %s391, 4
    %s401 = int_to_ptr.hbm [resolvable:$true] %s400
    %s402 = sshll.u32 %s392, 4
    %s403 = int_to_ptr.vmem [resolvable:$true] %s402
    %405 = dma.hbm_to_vmem [thread:$0]  %s401, 16, %s403, [#allocation2]
    %s406 = sadd.s32 %s16, 23
    %s407 = sld [smem:[#allocation4 + %s406]]
    %s408 = scalar_lea.hbm %s1, %s407
    %s409 = scalar_lea.vmem [#allocation5], 23
    // Predicated region
    $region94: #{tpu_custom_call.1} parent=1 // pred_check
      _
    $region95: #{tpu_custom_call.1} parent=1 // pred_check_branch
      %411 = sbr.rel target = $region97
    $region96: #{tpu_custom_call.1} parent=1 // pred_region
      %412 = sst [smem:[#allocation9]] [#allocation56]
      %413 = sst [smem:[#allocation10]] [#allocation55]
    $region97: #{tpu_custom_call.1} parent=1 // pred_fallthru
      _
    %415 = shalt.err (0)
    %s417 = sshll.u32 %s408, 4
    %s418 = int_to_ptr.hbm [resolvable:$true] %s417
    %s419 = sshll.u32 %s409, 4
    %s420 = int_to_ptr.vmem [resolvable:$true] %s419
    %422 = dma.hbm_to_vmem [thread:$0]  %s418, 16, %s420, [#allocation2]
    %s423 = sadd.s32 %s16, 24
    %s424 = sld [smem:[#allocation4 + %s423]]
    %s425 = scalar_lea.hbm %s1, %s424
    %s426 = scalar_lea.vmem [#allocation5], 24
    // Predicated region
    $region98: #{tpu_custom_call.1} parent=1 // pred_check
      _
    $region99: #{tpu_custom_call.1} parent=1 // pred_check_branch
      %428 = sbr.rel target = $region101
    $region100: #{tpu_custom_call.1} parent=1 // pred_region
      %429 = sst [smem:[#allocation9]] [#allocation58]
      %430 = sst [smem:[#allocation10]] [#allocation57]
    $region101: #{tpu_custom_call.1} parent=1 // pred_fallthru
      _
    %432 = shalt.err (0)
    %s434 = sshll.u32 %s425, 4
    %s435 = int_to_ptr.hbm [resolvable:$true] %s434
    %s436 = sshll.u32 %s426, 4
    %s437 = int_to_ptr.vmem [resolvable:$true] %s436
    %439 = dma.hbm_to_vmem [thread:$0]  %s435, 16, %s437, [#allocation2]
    %s440 = sadd.s32 %s16, 25
    %s441 = sld [smem:[#allocation4 + %s440]]
    %s442 = scalar_lea.hbm %s1, %s441
    %s443 = scalar_lea.vmem [#allocation5], 25
    // Predicated region
    $region102: #{tpu_custom_call.1} parent=1 // pred_check
      _
    $region103: #{tpu_custom_call.1} parent=1 // pred_check_branch
      %445 = sbr.rel target = $region105
    $region104: #{tpu_custom_call.1} parent=1 // pred_region
      %446 = sst [smem:[#allocation9]] [#allocation60]
      %447 = sst [smem:[#allocation10]] [#allocation59]
    $region105: #{tpu_custom_call.1} parent=1 // pred_fallthru
      _
    %449 = shalt.err (0)
    %s451 = sshll.u32 %s442, 4
    %s452 = int_to_ptr.hbm [resolvable:$true] %s451
    %s453 = sshll.u32 %s443, 4
    %s454 = int_to_ptr.vmem [resolvable:$true] %s453
    %456 = dma.hbm_to_vmem [thread:$0]  %s452, 16, %s454, [#allocation2]
    %s457 = sadd.s32 %s16, 26
    %s458 = sld [smem:[#allocation4 + %s457]]
    %s459 = scalar_lea.hbm %s1, %s458
    %s460 = scalar_lea.vmem [#allocation5], 26
    // Predicated region
    $region106: #{tpu_custom_call.1} parent=1 // pred_check
      _
    $region107: #{tpu_custom_call.1} parent=1 // pred_check_branch
      %462 = sbr.rel target = $region109
    $region108: #{tpu_custom_call.1} parent=1 // pred_region
      %463 = sst [smem:[#allocation9]] [#allocation62]
      %464 = sst [smem:[#allocation10]] [#allocation61]
    $region109: #{tpu_custom_call.1} parent=1 // pred_fallthru
      _
    %466 = shalt.err (0)
    %s468 = sshll.u32 %s459, 4
    %s469 = int_to_ptr.hbm [resolvable:$true] %s468
    %s470 = sshll.u32 %s460, 4
    %s471 = int_to_ptr.vmem [resolvable:$true] %s470
    %473 = dma.hbm_to_vmem [thread:$0]  %s469, 16, %s471, [#allocation2]
    %s474 = sadd.s32 %s16, 27
    %s475 = sld [smem:[#allocation4 + %s474]]
    %s476 = scalar_lea.hbm %s1, %s475
    %s477 = scalar_lea.vmem [#allocation5], 27
    // Predicated region
    $region110: #{tpu_custom_call.1} parent=1 // pred_check
      _
    $region111: #{tpu_custom_call.1} parent=1 // pred_check_branch
      %479 = sbr.rel target = $region113
    $region112: #{tpu_custom_call.1} parent=1 // pred_region
      %480 = sst [smem:[#allocation9]] [#allocation64]
      %481 = sst [smem:[#allocation10]] [#allocation63]
    $region113: #{tpu_custom_call.1} parent=1 // pred_fallthru
      _
    %483 = shalt.err (0)
    %s485 = sshll.u32 %s476, 4
    %s486 = int_to_ptr.hbm [resolvable:$true] %s485
    %s487 = sshll.u32 %s477, 4
    %s488 = int_to_ptr.vmem [resolvable:$true] %s487
    %490 = dma.hbm_to_vmem [thread:$0]  %s486, 16, %s488, [#allocation2]
    %s491 = sadd.s32 %s16, 28
    %s492 = sld [smem:[#allocation4 + %s491]]
    %s493 = scalar_lea.hbm %s1, %s492
    %s494 = scalar_lea.vmem [#allocation5], 28
    // Predicated region
    $region114: #{tpu_custom_call.1} parent=1 // pred_check
      _
    $region115: #{tpu_custom_call.1} parent=1 // pred_check_branch
      %496 = sbr.rel target = $region117
    $region116: #{tpu_custom_call.1} parent=1 // pred_region
      %497 = sst [smem:[#allocation9]] [#allocation66]
      %498 = sst [smem:[#allocation10]] [#allocation65]
    $region117: #{tpu_custom_call.1} parent=1 // pred_fallthru
      _
    %500 = shalt.err (0)
    %s502 = sshll.u32 %s493, 4
    %s503 = int_to_ptr.hbm [resolvable:$true] %s502
    %s504 = sshll.u32 %s494, 4
    %s505 = int_to_ptr.vmem [resolvable:$true] %s504
    %507 = dma.hbm_to_vmem [thread:$0]  %s503, 16, %s505, [#allocation2]
    %s508 = sadd.s32 %s16, 29
    %s509 = sld [smem:[#allocation4 + %s508]]
    %s510 = scalar_lea.hbm %s1, %s509
    %s511 = scalar_lea.vmem [#allocation5], 29
    // Predicated region
    $region118: #{tpu_custom_call.1} parent=1 // pred_check
      _
    $region119: #{tpu_custom_call.1} parent=1 // pred_check_branch
      %513 = sbr.rel target = $region121
    $region120: #{tpu_custom_call.1} parent=1 // pred_region
      %514 = sst [smem:[#allocation9]] [#allocation68]
      %515 = sst [smem:[#allocation10]] [#allocation67]
    $region121: #{tpu_custom_call.1} parent=1 // pred_fallthru
      _
    %517 = shalt.err (0)
    %s519 = sshll.u32 %s510, 4
    %s520 = int_to_ptr.hbm [resolvable:$true] %s519
    %s521 = sshll.u32 %s511, 4
    %s522 = int_to_ptr.vmem [resolvable:$true] %s521
    %524 = dma.hbm_to_vmem [thread:$0]  %s520, 16, %s522, [#allocation2]
    %s525 = sadd.s32 %s16, 30
    %s526 = sld [smem:[#allocation4 + %s525]]
    %s527 = scalar_lea.hbm %s1, %s526
    %s528 = scalar_lea.vmem [#allocation5], 30
    // Predicated region
    $region122: #{tpu_custom_call.1} parent=1 // pred_check
      _
    $region123: #{tpu_custom_call.1} parent=1 // pred_check_branch
      %530 = sbr.rel target = $region125
    $region124: #{tpu_custom_call.1} parent=1 // pred_region
      %531 = sst [smem:[#allocation9]] [#allocation70]
      %532 = sst [smem:[#allocation10]] [#allocation69]
    $region125: #{tpu_custom_call.1} parent=1 // pred_fallthru
      _
    %534 = shalt.err (0)
    %s536 = sshll.u32 %s527, 4
    %s537 = int_to_ptr.hbm [resolvable:$true] %s536
    %s538 = sshll.u32 %s528, 4
    %s539 = int_to_ptr.vmem [resolvable:$true] %s538
    %541 = dma.hbm_to_vmem [thread:$0]  %s537, 16, %s539, [#allocation2]
    %s542 = sadd.s32 %s16, 31
    %s543 = sld [smem:[#allocation4 + %s542]]
    %s544 = scalar_lea.hbm %s1, %s543
    %s545 = scalar_lea.vmem [#allocation5], 31
    // Predicated region
    $region126: #{tpu_custom_call.1} parent=1 // pred_check
      _
    $region127: #{tpu_custom_call.1} parent=1 // pred_check_branch
      %547 = sbr.rel target = $region129
    $region128: #{tpu_custom_call.1} parent=1 // pred_region
      %548 = sst [smem:[#allocation9]] [#allocation72]
      %549 = sst [smem:[#allocation10]] [#allocation71]
    $region129: #{tpu_custom_call.1} parent=1 // pred_fallthru
      _
    %551 = shalt.err (0)
    %s553 = sshll.u32 %s544, 4
    %s554 = int_to_ptr.hbm [resolvable:$true] %s553
    %s555 = sshll.u32 %s545, 4
    %s556 = int_to_ptr.vmem [resolvable:$true] %s555
    %558 = dma.hbm_to_vmem [thread:$0]  %s554, 16, %s556, [#allocation2]
    %560 = dma.done [#allocation2], 16
    %562 = dma.done [#allocation2], 16
    %564 = dma.done [#allocation2], 16
    %566 = dma.done [#allocation2], 16
    %568 = dma.done [#allocation2], 16
    %570 = dma.done [#allocation2], 16
    %572 = dma.done [#allocation2], 16
    %574 = dma.done [#allocation2], 16
    %576 = dma.done [#allocation2], 16
    %578 = dma.done [#allocation2], 16
    %580 = dma.done [#allocation2], 16
    %582 = dma.done [#allocation2], 16
    %584 = dma.done [#allocation2], 16
    %586 = dma.done [#allocation2], 16
    %588 = dma.done [#allocation2], 16
    %590 = dma.done [#allocation2], 16
    %592 = dma.done [#allocation2], 16
    %594 = dma.done [#allocation2], 16
    %596 = dma.done [#allocation2], 16
    %598 = dma.done [#allocation2], 16
    %600 = dma.done [#allocation2], 16
    %602 = dma.done [#allocation2], 16
    %604 = dma.done [#allocation2], 16
    %606 = dma.done [#allocation2], 16
    %608 = dma.done [#allocation2], 16
    %610 = dma.done [#allocation2], 16
    %612 = dma.done [#allocation2], 16
    %614 = dma.done [#allocation2], 16
    %616 = dma.done [#allocation2], 16
    %618 = dma.done [#allocation2], 16
    %620 = dma.done [#allocation2], 16
    %622 = dma.done [#allocation2], 16
    // Predicated region
    $region130: #{tpu_custom_call.1} parent=1 // pred_check
      _
    $region131: #{tpu_custom_call.1} parent=1 // pred_check_branch
      %624 = sbr.rel (0) target = $region133
    $region132: #{tpu_custom_call.1} parent=1 // pred_region
      %626 = vsyncadd [#allocation6], 0
      %s627 = sshll.u32 [#allocation5], 4
      %s628 = int_to_ptr.vmem [resolvable:$true] %s627
      %s629 = sshll.u32 %s2, 4
      %s630 = int_to_ptr.hbm [resolvable:$true] %s629
      %635 = dma.vmem_to_hbm [thread:$0]  %s628, 512, %s630, [#allocation6], 128, 128, 8
    $region133: #{tpu_custom_call.1} parent=1 // pred_fallthru
      _
    // Predicated region
    $region134: #{tpu_custom_call.1} parent=1 // pred_check
      _
    $region135: #{tpu_custom_call.1} parent=1 // pred_check_branch
      %637 = sbr.rel (0) target = $region137
    $region136: #{tpu_custom_call.1} parent=1 // pred_region
      %639 = dma.done [#allocation6], 512
    $region137: #{tpu_custom_call.1} parent=1 // pred_fallthru
      _
    %640 = vsyncpa [#allocation6], 1
  %641 = vsyncmov [#allocation2]
  %s642 = vpop.sfrf %641
  %p643 = scmp.eq.s32.totalorder %s642, 0
  %p644 = pneg %p643
  %646 = shalt.err (%p644)

</llo_original>
